<compile_context>
chip_gen: v6e
topology: v6e:2x2x1
jax: 0.10.0
libtpu: 0.0.40
codegen_flags: <defaults>
</compile_context>

<pallas_src>
import functools
from typing import NamedTuple

import jax
import jax.numpy as jnp
from jax.experimental import pallas as pl
from jax.experimental.pallas import tpu as pltpu

LANE = 128           # feature dims padded to multiples of this (lane-dense outputs)
SUBLANE = 16         # bf16 sublane packing -> dst tiles padded to 16
MAX_TILE_DST = 512   # raised per perf review (was 256)
MAX_TILE_SRC = 2048  # raised per perf review (was 512)
BN_EPS = 1e-5
NEG_INF = -1e9       # bias for padded class columns (masks them in log_softmax)


def _round_up(n, m):
    return ((n + m - 1) // m) * m


def _cdiv(a, b):
    return (a + b - 1) // b


def _pad2(x, rows, cols, fill=0.0):
    r, c = x.shape
    return jnp.pad(x, ((0, rows - r), (0, cols - c)), constant_values=fill)


# --------------------------- per-generation VMEM budget ---------------------------

def _vmem_capacity_bytes():
    try:
        info = pltpu.get_tpu_info()
        cap = int(getattr(info, "vmem_capacity_bytes", 0))
        if cap > 0:
            return cap
    except Exception:
        pass
    return 64 * 1024 * 1024          # conservative default (v7x physical size)


_VMEM_CAPACITY = _vmem_capacity_bytes()
# 3/4 of physical, capped at ~100 MiB (review: push v5e/v6e to ~96-100 MiB, v7x to ~48 MiB).
_VMEM_BUDGET = min((3 * _VMEM_CAPACITY) // 4, 100 * 1024 * 1024)


# ------------------ probe: single-buffering of grid-constant blocks ----------------

def _probe_buffered1():
    """pl.Buffered(1) frees the second buffer of grid-constant blocks (resident x, W, bias).
    Probe it once on a tiny kernel so an unsupported pipeline_mode can never break the real
    kernels (requirement #1: must compile and run)."""
    def _k(x_ref, o_ref):
        o_ref[...] = x_ref[...] + 1.0

    try:
        f = pl.pallas_call(
            _k,
            out_shape=jax.ShapeDtypeStruct((8, 128), jnp.float32),
            grid=(2,),
            in_specs=[pl.BlockSpec((8, 128), lambda i: (0, 0),
                                   pipeline_mode=pl.Buffered(1))],
            out_specs=pl.BlockSpec((8, 128), lambda i: (0, 0)),
        )
        res = jax.block_until_ready(f(jnp.zeros((8, 128), jnp.float32)))
        return bool(jnp.all(res == 1.0))
    except Exception:
        return False


_HAS_BUFFERED1 = _probe_buffered1()


def _const_spec(block_shape):
    """BlockSpec for an input whose block index never changes across the grid."""
    idx_map = lambda i, k: (0,) * len(block_shape)
    if _HAS_BUFFERED1:
        return pl.BlockSpec(block_shape, idx_map, pipeline_mode=pl.Buffered(1))
    return pl.BlockSpec(block_shape, idx_map)


# ----------------------------------- layer plan ------------------------------------

class LayerPlan(NamedTuple):
    nd: int
    ns: int
    d_in: int
    d_out: int
    din_pad: int
    dout_pad: int
    tile_dst: int
    tile_src: int
    nd_pad: int
    ns_pad: int
    resident_x: bool
    final: bool


def plan_layer(nd, ns, d_in, d_out, final):
    din_pad = _round_up(d_in, LANE)
    dout_pad = _round_up(d_out, LANE)
    out_bytes = 4 if final else 2

    # dst tile: aim for >= 2 dst tiles so v7x's two TensorCores both get work ("parallel"
    # axis is the only one sharded across them), capped at the ceiling, >= one bf16 pack.
    tile_dst = min(MAX_TILE_DST, max(SUBLANE, _round_up(_cdiv(nd, 2), SUBLANE)))
    nd_pad = _round_up(nd, tile_dst)
    ns_eff = max(ns, nd_pad)         # self features are read from x[:nd_pad]

    def vmem_usage(ts, resident):
        a = 2 * tile_dst * ts * 2                                    # A (double buffered)
        if resident:
            nsp = _round_up(ns_eff, ts)
            x = nsp * din_pad * 2 * (1 if _HAS_BUFFERED1 else 2)     # resident x
        else:
            x = 2 * ts * din_pad * 2 + 2 * tile_dst * din_pad * 2    # x + xs streams
        w = 2 * din_pad * dout_pad * 2 * (1 if _HAS_BUFFERED1 else 2)
        o = 2 * tile_dst * dout_pad * out_bytes
        acc = tile_dst * din_pad * 4
        return a + x + w + o + acc + 4 * dout_pad

    tile_src = min(MAX_TILE_SRC, _round_up(ns_eff, LANE))
    resident = vmem_usage(tile_src, True) <= _VMEM_BUDGET
    if not resident:
        # streamed fallback: shrink tiles until the double-buffered working set fits
        while vmem_usage(tile_src, False) > _VMEM_BUDGET:
            if tile_src > LANE:
                tile_src = max(LANE, _round_up(tile_src // 2, LANE))
            elif tile_dst > SUBLANE:
                tile_dst = max(SUBLANE, _round_up(tile_dst // 2, SUBLANE))
            else:
                break
        nd_pad = _round_up(nd, tile_dst)
        ns_eff = max(ns, nd_pad)
    ns_pad = _round_up(ns_eff, tile_src)

    return LayerPlan(nd, ns, d_in, d_out, din_pad, dout_pad,
                     tile_dst, tile_src, nd_pad, ns_pad, resident, final)


# ----------------------------------- Pallas kernels --------------------------------

def _project(acc_ref, xs, w_ref, b_ref, o_ref, final):
    """Projection as two accumulated MXU dots (no [TD, 2*DIN] concat copy), folded bias,
    then ReLU (hidden; BN pre-folded, dropout identity in eval) or log_softmax (final)."""
    out = (jnp.dot(xs, w_ref[0], preferred_element_type=jnp.float32)
           + jnp.dot(acc_ref[...].astype(jnp.bfloat16), w_ref[1],
                     preferred_element_type=jnp.float32)
           + b_ref[...])
    if final:
        m = jnp.max(out, axis=-1, keepdims=True)
        z = out - m
        lse = jnp.log(jnp.sum(jnp.exp(z), axis=-1, keepdims=True))
        o_ref[...] = (z - lse).astype(o_ref.dtype)
    else:
        o_ref[...] = jnp.maximum(out, 0.0).astype(o_ref.dtype)


def _sage_kernel_resident(a_ref, x_ref, w_ref, b_ref, o_ref, acc_ref, *,
                          final, tile_dst, tile_src):
    """GraphSAGE('mean') layer with VMEM-resident src features.

    a_ref  : [TD, TS]            bf16 row-normalized adjacency tile
    x_ref  : [NS_PAD, DIN]       bf16 full src-feature matrix (DMA'd once, grid-constant)
    w_ref  : [2, DIN, DOUT]      bf16 [W_self, W_neigh] (BN folded for hidden layers)
    b_ref  : [1, DOUT]           f32  folded bias (padded classes = -1e9 on final layer)
    o_ref  : [TD, DOUT]          layer output tile (bf16 hidden, f32 final)
    acc_ref: [TD, DIN]           f32  VMEM accumulator for h_neigh = A @ x
    """
    i = pl.program_id(0)
    k = pl.program_id(1)

    @pl.when(k == 0)
    def _init():
        acc_ref[...] = jnp.zeros_like(acc_ref)

    src0 = pl.multiple_of(k * tile_src, tile_src)
    acc_ref[...] += jnp.dot(a_ref[...], x_ref[pl.ds(src0, tile_src), :],
                            preferred_element_type=jnp.float32)

    @pl.when(k == pl.num_programs(1) - 1)
    def _finalize():
        # dst nodes are the first rows of the src features -> self rows from the same buffer
        dst0 = pl.multiple_of(i * tile_dst, tile_dst)
        xs = x_ref[pl.ds(dst0, tile_dst), :]
        _project(acc_ref, xs, w_ref, b_ref, o_ref, final)


def _sage_kernel_streamed(a_ref, x_ref, xs_ref, w_ref, b_ref, o_ref, acc_ref, *, final):
    """Fallback for MFGs whose src features don't fit VMEM: x streamed per reduction tile."""
    k = pl.program_id(1)

    @pl.when(k == 0)
    def _init():
        acc_ref[...] = jnp.zeros_like(acc_ref)

    acc_ref[...] += jnp.dot(a_ref[...], x_ref[...],
                            preferred_element_type=jnp.float32)

    @pl.when(k == pl.num_programs(1) - 1)
    def _finalize():
        _project(acc_ref, xs_ref[...], w_ref, b_ref, o_ref, final)


def _sage_layer_call(a_pad, x_pad, w_cat, b_row, plan: LayerPlan):
    tile_dst, tile_src = plan.tile_dst, plan.tile_src
    nd_pad, ns_pad = plan.nd_pad, plan.ns_pad
    din_pad, dout_pad = plan.din_pad, plan.dout_pad
    nd_tiles = nd_pad // tile_dst
    ns_tiles = ns_pad // tile_src
    out_dtype = jnp.float32 if plan.final else jnp.bfloat16

    a_spec = pl.BlockSpec((tile_dst, tile_src), lambda i, k: (i, k))
    w_spec = _const_spec((2, din_pad, dout_pad))
    b_spec = _const_spec((1, dout_pad))
    out_spec = pl.BlockSpec((tile_dst, dout_pad), lambda i, k: (i, 0))

    if plan.resident_x:
        kernel = functools.partial(_sage_kernel_resident, final=plan.final,
                                   tile_dst=tile_dst, tile_src=tile_src)
        in_specs = [a_spec, _const_spec((ns_pad, din_pad)), w_spec, b_spec]
        operands = (a_pad, x_pad, w_cat, b_row)
        x_bytes = x_pad.size * 2
    else:
        kernel = functools.partial(_sage_kernel_streamed, final=plan.final)
        in_specs = [a_spec,
                    pl.BlockSpec((tile_src, din_pad), lambda i, k: (k, 0)),
                    pl.BlockSpec((tile_dst, din_pad), lambda i, k: (i, 0)),
                    w_spec, b_spec]
        operands = (a_pad, x_pad, x_pad, w_cat, b_row)
        x_bytes = x_pad.size * 2 * nd_tiles + nd_pad * din_pad * 2

    flops = 2 * nd_pad * ns_pad * din_pad + 4 * nd_pad * din_pad * dout_pad
    bytes_accessed = (a_pad.size * 2 + x_bytes + w_cat.size * 2 + b_row.size * 4
                      + nd_pad * dout_pad * (4 if plan.final else 2))

    return pl.pallas_call(
        kernel,
        out_shape=jax.ShapeDtypeStruct((nd_pad, dout_pad), out_dtype),
        grid_spec=pltpu.PrefetchScalarGridSpec(
            num_scalar_prefetch=0,
            grid=(nd_tiles, ns_tiles),
            in_specs=in_specs,
            out_specs=out_spec,
            scratch_shapes=[pltpu.VMEM((tile_dst, din_pad), jnp.float32)],
        ),
        compiler_params=pltpu.CompilerParams(
            dimension_semantics=("parallel", "arbitrary"),
            vmem_limit_bytes=int(_VMEM_BUDGET),
        ),
        cost_estimate=pl.CostEstimate(
            flops=int(flops),
            transcendentals=int(nd_pad * dout_pad) if plan.final else 0,
            bytes_accessed=int(bytes_accessed),
        ),
    )(*operands)


# ------------------------- host-side folding / packing (once) ----------------------

def _fold_bn(conv, bn, eps=BN_EPS):
    """Fold eval-mode BatchNorm1d into the SAGEConv weights/bias."""
    scale = bn["gamma"] * jax.lax.rsqrt(bn["rvar"] + eps)            # [1, d_out]
    w_self = conv["w_self_t"] * scale
    w_neigh = conv["w_neigh_t"] * scale
    b = (conv["b"] - bn["rmean"]) * scale + bn["beta"]
    return w_self, w_neigh, b


def _pack_layer_params(conv, bn, plan: LayerPlan):
    if plan.final:
        w_self, w_neigh, b = conv["w_self_t"], conv["w_neigh_t"], conv["b"]
        pad_bias = NEG_INF
    else:
        w_self, w_neigh, b = _fold_bn(conv, bn)
        pad_bias = 0.0
    ws = _pad2(w_self.astype(jnp.float32), plan.din_pad, plan.dout_pad)
    wn = _pad2(w_neigh.astype(jnp.float32), plan.din_pad, plan.dout_pad)
    w_cat = jnp.stack([ws, wn], axis=0).astype(jnp.bfloat16)         # [2, DIN, DOUT]
    b_row = jnp.full((1, plan.dout_pad), pad_bias, jnp.float32)
    b_row = b_row.at[0, :plan.d_out].set(b.reshape(-1).astype(jnp.float32))
    return {"w": w_cat, "b": b_row}


def prepare_model(params, mfgs):
    """Host-side, once per set of MFGs: plan tiles, fold BN, pack weights, and pad + cast the
    dense adjacencies to bf16 so the jitted forward never re-pads the O(nd*ns) adjacency.
    NOTE: keep A in f32 instead if tighter than ~0.4%/edge accuracy is ever needed."""
    num_layers = len(params["convs"])
    plans, packed, adjs = [], [], []
    for li in range(num_layers):
        conv = params["convs"][li]
        d_in, d_out = conv["w_self_t"].shape
        nd, ns = mfgs[li]["adj"].shape
        final = li == num_layers - 1
        plan = plan_layer(nd, ns, d_in, d_out, final)
        bn = None if final else params["bns"][li]
        plans.append(plan)
        packed.append(_pack_layer_params(conv, bn, plan))
        adjs.append(_pad2(mfgs[li]["adj"], plan.nd_pad, plan.ns_pad).astype(jnp.bfloat16))
    return tuple(plans), packed, adjs


# ---------------------------------- model wrapper -----------------------------------

def push_and_pull(history_emb, x, batch_size, n_id):
    """history.push(x[:batch_size], n_id[:batch_size]); h = history.pull(n_id[batch_size:]);
    return cat([x[:batch_size], h])  (pure indexing -> plain JAX glue)."""
    history_emb = history_emb.at[n_id[:batch_size]].set(x[:batch_size])
    pulled = history_emb[n_id[batch_size:]]
    return jnp.concatenate([x[:batch_size], pulled], axis=0), history_emb


def _fit_rows(x, rows):
    r = x.shape[0]
    if r == rows:
        return x
    if r > rows:
        return x[:rows]
    return jnp.pad(x, ((0, rows - r), (0, 0)))


def graphsage_forward(packed, adjs, history_emb, x, batch_size, src_ids, plans):
    """Eval-mode forward: BatchNorm folded, dropout identity, use_residual=False (default)."""
    x, history_emb = push_and_pull(history_emb, x, batch_size, src_ids)
    # first layer: pad rows + feature lanes and cast to bf16 once (activation-sized)
    x = _pad2(x.astype(jnp.bfloat16), plans[0].ns_pad, plans[0].din_pad)
    for li, plan in enumerate(plans):
        if li > 0:
            x = _fit_rows(x, plan.ns_pad)     # cheap activation-sized row fixup
        x = _sage_layer_call(adjs[li], x, packed[li]["w"], packed[li]["b"], plan)
    last = plans[-1]
    return x[:last.nd, :last.d_out], history_emb


def reference_forward(params, history_emb, mfgs, x, batch_size):
    """Pure-JAX f32 reference of the same eval-mode forward."""
    x, _ = push_and_pull(history_emb, x, batch_size, mfgs[0]["src_ids"])
    n = len(params["convs"])
    for li in range(n):
        a = mfgs[li]["adj"]
        c = params["convs"][li]
        h_neigh = a @ x
        h_self = x[:a.shape[0]]
        out = h_self @ c["w_self_t"] + h_neigh @ c["w_neigh_t"] + c["b"]
        if li < n - 1:
            bn = params["bns"][li]
            out = (out - bn["rmean"]) * jax.lax.rsqrt(bn["rvar"] + BN_EPS) * bn["gamma"] + bn["beta"]
            x = jnp.maximum(out, 0.0)
        else:
            x = jax.nn.log_softmax(out, axis=-1)
    return x


# --------------------------------- deterministic init --------------------------------

def init_params(key, num_layers, in_feats, h_feats, num_classes):
    dims = [in_feats] + [h_feats] * (num_layers - 1) + [num_classes]
    convs, bns = [], []
    for li in range(num_layers):
        d_in, d_out = dims[li], dims[li + 1]
        key, k1, k2, k3, k4, k5, k6, k7 = jax.random.split(key, 8)
        scale = 1.0 / jnp.sqrt(jnp.float32(d_in))
        convs.append({
            # pre-transposed weights: [in_feats, out_feats]
            "w_self_t": jax.random.normal(k1, (d_in, d_out), jnp.float32) * scale,
            "w_neigh_t": jax.random.normal(k2, (d_in, d_out), jnp.float32) * scale,
            "b": jax.random.normal(k3, (1, d_out), jnp.float32) * 0.1,
        })
        if li < num_layers - 1:
            bns.append({
                "gamma": 1.0 + 0.1 * jax.random.normal(k4, (1, d_out), jnp.float32),
                "beta": 0.1 * jax.random.normal(k5, (1, d_out), jnp.float32),
                "rmean": 0.1 * jax.random.normal(k6, (1, d_out), jnp.float32),
                "rvar": 1.0 + 0.1 * jnp.abs(jax.random.normal(k7, (1, d_out), jnp.float32)),
            })
    return {"convs": convs, "bns": bns}


def make_mfg(key, num_dst, num_src, num_nodes, fanout=4):
    """Synthetic DGL block: dense row-normalized mean-aggregation adjacency + src node IDs.
    TODO(synk): at production sizes replace dense A with a scalar-prefetch neighbor gather."""
    k1, k2 = jax.random.split(key)
    nbrs = jax.random.randint(k1, (num_dst, fanout), 0, num_src)
    a = jnp.zeros((num_dst, num_src), jnp.float32)
    a = a.at[jnp.arange(num_dst)[:, None], nbrs].add(1.0)
    deg = jnp.clip(a.sum(axis=1, keepdims=True), 1.0, None)
    a = a / deg
    src_ids = jax.random.permutation(k2, num_nodes)[:num_src]
    return {"adj": a, "src_ids": src_ids}


# --------------------------------------- main ----------------------------------------

if __name__ == "__main__":
    key = jax.random.PRNGKey(0)

    num_layers = 3
    num_nodes = 64          # History table size
    in_feats = 16
    h_feats = 32
    num_classes = 8
    batch_size = 8

    # MFG sizes (neighbor-sampling style): src0=48 -> dst0=24 = src1 -> dst1=16 = src2 -> dst2=8
    k_p, k_x, k_g0, k_g1, k_g2 = jax.random.split(key, 5)
    params = init_params(k_p, num_layers, in_feats, h_feats, num_classes)
    history_emb = jnp.zeros((num_nodes, in_feats), jnp.float32)

    mfgs = [
        make_mfg(k_g0, num_dst=24, num_src=48, num_nodes=num_nodes),
        make_mfg(k_g1, num_dst=16, num_src=24, num_nodes=num_nodes),
        make_mfg(k_g2, num_dst=8, num_src=16, num_nodes=num_nodes),
    ]
    x = jax.random.normal(k_x, (48, in_feats), jnp.float32)

    # One-time host-side preparation (tile plans, BN folding, A padding/cast) -- outside jit.
    plans, packed, adjs = prepare_model(params, mfgs)

    fwd = jax.jit(graphsage_forward, static_argnames=("batch_size", "plans"))
    out, new_history = fwd(packed, adjs, history_emb, x,
                           batch_size=batch_size, src_ids=mfgs[0]["src_ids"], plans=plans)
    out = jax.block_until_ready(out)
    jax.block_until_ready(new_history)

    assert out.shape == (batch_size, num_classes)
    # log_softmax rows must sum to 1 in prob space
    assert bool(jnp.allclose(jnp.exp(out).sum(axis=-1), 1.0, atol=1e-4))

    # compare against pure-JAX f32 reference (bf16 MXU operands -> loose tolerance)
    ref = reference_forward(params, history_emb, mfgs, x, batch_size)
    max_err = float(jnp.max(jnp.abs(out - ref)))
    assert max_err < 0.2, f"max |pallas - reference| = {max_err}"

    print("KERNEL_OK")
</pallas_src>

<mosaic_0001>
module attributes {stable_mosaic.version = 11 : i64} {
  func.func @_k(%arg0: i32, %arg1: memref<8x128xf32, #tpu.memory_space<vmem>>, %arg2: memref<8x128xf32, #tpu.memory_space<vmem>>) attributes {dimension_semantics = [#tpu.dimension_semantics<arbitrary>], iteration_bounds = array<i64: 2>, scalar_prefetch = 0 : i64, scratch_operands = 0 : i64, tpu.core_type = #tpu.core_type<tc>, window_params = [{pipeline_mode = #tpu.pipeline_mode<synchronous>, transform_indices = @transform_0, window_bounds = array<i64: 8, 128>}, {pipeline_mode = #tpu.pipeline_mode<synchronous>, transform_indices = @transform_1, window_bounds = array<i64: 8, 128>}]} {
    %c0 = arith.constant 0 : index
    %c0_0 = arith.constant 0 : index
    %0 = vector.load %arg1[%c0, %c0_0] : memref<8x128xf32, #tpu.memory_space<vmem>>, vector<8x128xf32>
    %cst = arith.constant 1.000000e+00 : f32
    %1 = vector.broadcast %cst : f32 to vector<8x128xf32>
    %2 = arith.addf %0, %1 : vector<8x128xf32>
    %c0_1 = arith.constant 0 : index
    %c0_2 = arith.constant 0 : index
    %3 = vector.load %arg2[%c0_1, %c0_2] : memref<8x128xf32, #tpu.memory_space<vmem>>, vector<8x128xf32>
    tpu.vector_store %arg2[%c0_1, %c0_2], %2 {strides = array<i32>} : memref<8x128xf32, #tpu.memory_space<vmem>>, vector<8x128xf32>,
    return
  }
  func.func @transform_0(%arg0: i32) -> (i32, i32) {
    %c0_i32 = arith.constant 0 : i32
    %c0_i32_0 = arith.constant 0 : i32
    %c0_i32_1 = arith.constant 0 : i32
    return %c0_i32, %c0_i32_0 : i32, i32
  }
  func.func @transform_1(%arg0: i32) -> (i32, i32) {
    %c0_i32 = arith.constant 0 : i32
    %c0_i32_0 = arith.constant 0 : i32
    %c0_i32_1 = arith.constant 0 : i32
    return %c0_i32, %c0_i32_0 : i32, i32
  }
}

module attributes {stable_mosaic.version = 11 : i64} {
  func.func @_sage_kernel_resident(%arg0: i32, %arg1: i32, %arg2: memref<16x128xbf16, #tpu.memory_space<vmem>>, %arg3: memref<128x128xbf16, #tpu.memory_space<vmem>>, %arg4: memref<2x128x128xbf16, #tpu.memory_space<vmem>>, %arg5: memref<1x128xf32, #tpu.memory_space<vmem>>, %arg6: memref<16x128xbf16, #tpu.memory_space<vmem>>, %arg7: memref<16x128xf32, #tpu.memory_space<vmem>>) attributes {dimension_semantics = [#tpu.dimension_semantics<parallel>, #tpu.dimension_semantics<arbitrary>], iteration_bounds = array<i64: 2, 1>, scalar_prefetch = 0 : i64, scratch_operands = 1 : i64, tpu.core_type = #tpu.core_type<tc>, window_params = [{transform_indices = @transform_0, window_bounds = array<i64: 16, 128>}, {pipeline_mode = #tpu.pipeline_mode<synchronous>, transform_indices = @transform_1, window_bounds = array<i64: 128, 128>}, {pipeline_mode = #tpu.pipeline_mode<synchronous>, transform_indices = @transform_2, window_bounds = array<i64: 2, 128, 128>}, {pipeline_mode = #tpu.pipeline_mode<synchronous>, transform_indices = @transform_3, window_bounds = array<i64: 1, 128>}, {transform_indices = @transform_4, window_bounds = array<i64: 16, 128>}]} {
    %c0_i32 = arith.constant 0 : i32
    %0 = arith.cmpi eq, %arg1, %c0_i32 : i32
    %1 = arith.extui %0 : i1 to i32
    %c0_i32_0 = arith.constant 0 : i32
    %2 = arith.cmpi ne, %1, %c0_i32_0 : i32
    scf.if %2 {
      %cst_9 = arith.constant 0.000000e+00 : f32
      %15 = vector.broadcast %cst_9 : f32 to vector<16x128xf32>
      %c0_10 = arith.constant 0 : index
      %c0_11 = arith.constant 0 : index
      %16 = vector.load %arg7[%c0_10, %c0_11] : memref<16x128xf32, #tpu.memory_space<vmem>>, vector<16x128xf32>
      tpu.vector_store %arg7[%c0_10, %c0_11], %15 {strides = array<i32>} : memref<16x128xf32, #tpu.memory_space<vmem>>, vector<16x128xf32>,
    } else {
    }
    %c128_i32 = arith.constant 128 : i32
    %3 = arith.muli %arg1, %c128_i32 : i32
    %4 = tpu.assume_multiple %3, 128 : i32
    %c0 = arith.constant 0 : index
    %c0_1 = arith.constant 0 : index
    %5 = vector.load %arg7[%c0, %c0_1] : memref<16x128xf32, #tpu.memory_space<vmem>>, vector<16x128xf32>
    %c0_2 = arith.constant 0 : index
    %c0_3 = arith.constant 0 : index
    %6 = vector.load %arg2[%c0_2, %c0_3] : memref<16x128xbf16, #tpu.memory_space<vmem>>, vector<16x128xbf16>
    %7 = arith.index_cast %4 : i32 to index
    %c0_4 = arith.constant 0 : index
    %8 = vector.load %arg3[%7, %c0_4] : memref<128x128xbf16, #tpu.memory_space<vmem>>, vector<128x128xbf16>
    %cst = arith.constant dense<0.000000e+00> : vector<16x128xf32>
    %9 = tpu.matmul %6, %8, %cst {dimension_numbers = #tpu.dot_dimension_numbers<[1], [0], [0], [1], [0, 0, 1, 1], [], []>} : vector<16x128xbf16>, vector<128x128xbf16>, vector<16x128xf32> -> vector<16x128xf32>
    %10 = arith.addf %5, %9 : vector<16x128xf32>
    %c0_5 = arith.constant 0 : index
    %c0_6 = arith.constant 0 : index
    %11 = vector.load %arg7[%c0_5, %c0_6] : memref<16x128xf32, #tpu.memory_space<vmem>>, vector<16x128xf32>
    tpu.vector_store %arg7[%c0_5, %c0_6], %10 {strides = array<i32>} : memref<16x128xf32, #tpu.memory_space<vmem>>, vector<16x128xf32>,
    %c0_i32_7 = arith.constant 0 : i32
    %12 = arith.cmpi eq, %arg1, %c0_i32_7 : i32
    %13 = arith.extui %12 : i1 to i32
    %c0_i32_8 = arith.constant 0 : i32
    %14 = arith.cmpi ne, %13, %c0_i32_8 : i32
    scf.if %14 {
      %c16_i32 = arith.constant 16 : i32
      %15 = arith.muli %arg0, %c16_i32 : i32
      %16 = tpu.assume_multiple %15, 16 : i32
      %17 = arith.index_cast %16 : i32 to index
      %c0_9 = arith.constant 0 : index
      %18 = vector.load %arg3[%17, %c0_9] : memref<128x128xbf16, #tpu.memory_space<vmem>>, vector<16x128xbf16>
      %c0_10 = arith.constant 0 : index
      %c0_11 = arith.constant 0 : index
      %c0_12 = arith.constant 0 : index
      %19 = vector.load %arg4[%c0_10, %c0_11, %c0_12] : memref<2x128x128xbf16, #tpu.memory_space<vmem>>, vector<1x128x128xbf16>
      %20 = vector.shape_cast %19 : vector<1x128x128xbf16> to vector<128x128xbf16>
      %cst_13 = arith.constant dense<0.000000e+00> : vector<16x128xf32>
      %21 = tpu.matmul %18, %20, %cst_13 {dimension_numbers = #tpu.dot_dimension_numbers<[1], [0], [0], [1], [0, 0, 1, 1], [], []>} : vector<16x128xbf16>, vector<128x128xbf16>, vector<16x128xf32> -> vector<16x128xf32>
      %c0_14 = arith.constant 0 : index
      %c0_15 = arith.constant 0 : index
      %22 = vector.load %arg7[%c0_14, %c0_15] : memref<16x128xf32, #tpu.memory_space<vmem>>, vector<16x128xf32>
      %23 = arith.truncf %22 : vector<16x128xf32> to vector<16x128xbf16>
      %c1 = arith.constant 1 : index
      %c0_16 = arith.constant 0 : index
      %c0_17 = arith.constant 0 : index
      %24 = vector.load %arg4[%c1, %c0_16, %c0_17] : memref<2x128x128xbf16, #tpu.memory_space<vmem>>, vector<1x128x128xbf16>
      %25 = vector.shape_cast %24 : vector<1x128x128xbf16> to vector<128x128xbf16>
      %cst_18 = arith.constant dense<0.000000e+00> : vector<16x128xf32>
      %26 = tpu.matmul %23, %25, %cst_18 {dimension_numbers = #tpu.dot_dimension_numbers<[1], [0], [0], [1], [0, 0, 1, 1], [], []>} : vector<16x128xbf16>, vector<128x128xbf16>, vector<16x128xf32> -> vector<16x128xf32>
      %27 = arith.addf %21, %26 : vector<16x128xf32>
      %c0_19 = arith.constant 0 : index
      %c0_20 = arith.constant 0 : index
      %28 = vector.load %arg5[%c0_19, %c0_20] : memref<1x128xf32, #tpu.memory_space<vmem>>, vector<1x128xf32>
      %29 = vector.broadcast %28 : vector<1x128xf32> to vector<16x128xf32>
      %30 = arith.addf %27, %29 : vector<16x128xf32>
      %cst_21 = arith.constant 0.000000e+00 : f32
      %31 = vector.broadcast %cst_21 : f32 to vector<16x128xf32>
      %32 = arith.maximumf %30, %31 : vector<16x128xf32>
      %33 = arith.truncf %32 : vector<16x128xf32> to vector<16x128xbf16>
      %c0_22 = arith.constant 0 : index
      %c0_23 = arith.constant 0 : index
      %34 = vector.load %arg6[%c0_22, %c0_23] : memref<16x128xbf16, #tpu.memory_space<vmem>>, vector<16x128xbf16>
      tpu.vector_store %arg6[%c0_22, %c0_23], %33 {strides = array<i32>} : memref<16x128xbf16, #tpu.memory_space<vmem>>, vector<16x128xbf16>,
    } else {
    }
    return
  }
  func.func @transform_0(%arg0: i32, %arg1: i32) -> (i32, i32) {
    %c0_i32 = arith.constant 0 : i32
    return %arg0, %arg1 : i32, i32
  }
  func.func @transform_1(%arg0: i32, %arg1: i32) -> (i32, i32) {
    %c0_i32 = arith.constant 0 : i32
    %c0_i32_0 = arith.constant 0 : i32
    %c0_i32_1 = arith.constant 0 : i32
    return %c0_i32, %c0_i32_0 : i32, i32
  }
  func.func @transform_2(%arg0: i32, %arg1: i32) -> (i32, i32, i32) {
    %c0_i32 = arith.constant 0 : i32
    %c0_i32_0 = arith.constant 0 : i32
    %c0_i32_1 = arith.constant 0 : i32
    %c0_i32_2 = arith.constant 0 : i32
    return %c0_i32, %c0_i32_0, %c0_i32_1 : i32, i32, i32
  }
  func.func @transform_3(%arg0: i32, %arg1: i32) -> (i32, i32) {
    %c0_i32 = arith.constant 0 : i32
    %c0_i32_0 = arith.constant 0 : i32
    %c0_i32_1 = arith.constant 0 : i32
    return %c0_i32, %c0_i32_0 : i32, i32
  }
  func.func @transform_4(%arg0: i32, %arg1: i32) -> (i32, i32) {
    %c0_i32 = arith.constant 0 : i32
    %c0_i32_0 = arith.constant 0 : i32
    return %arg0, %c0_i32 : i32, i32
  }
}

module attributes {stable_mosaic.version = 11 : i64} {
  func.func @_sage_kernel_resident(%arg0: i32, %arg1: i32, %arg2: memref<16x128xbf16, #tpu.memory_space<vmem>>, %arg3: memref<128x128xbf16, #tpu.memory_space<vmem>>, %arg4: memref<2x128x128xbf16, #tpu.memory_space<vmem>>, %arg5: memref<1x128xf32, #tpu.memory_space<vmem>>, %arg6: memref<16x128xbf16, #tpu.memory_space<vmem>>, %arg7: memref<16x128xf32, #tpu.memory_space<vmem>>) attributes {dimension_semantics = [#tpu.dimension_semantics<parallel>, #tpu.dimension_semantics<arbitrary>], iteration_bounds = array<i64: 1, 1>, scalar_prefetch = 0 : i64, scratch_operands = 1 : i64, tpu.core_type = #tpu.core_type<tc>, window_params = [{transform_indices = @transform_0, window_bounds = array<i64: 16, 128>}, {pipeline_mode = #tpu.pipeline_mode<synchronous>, transform_indices = @transform_1, window_bounds = array<i64: 128, 128>}, {pipeline_mode = #tpu.pipeline_mode<synchronous>, transform_indices = @transform_2, window_bounds = array<i64: 2, 128, 128>}, {pipeline_mode = #tpu.pipeline_mode<synchronous>, transform_indices = @transform_3, window_bounds = array<i64: 1, 128>}, {transform_indices = @transform_4, window_bounds = array<i64: 16, 128>}]} {
    %c0_i32 = arith.constant 0 : i32
    %0 = arith.cmpi eq, %arg1, %c0_i32 : i32
    %1 = arith.extui %0 : i1 to i32
    %c0_i32_0 = arith.constant 0 : i32
    %2 = arith.cmpi ne, %1, %c0_i32_0 : i32
    scf.if %2 {
      %cst_9 = arith.constant 0.000000e+00 : f32
      %15 = vector.broadcast %cst_9 : f32 to vector<16x128xf32>
      %c0_10 = arith.constant 0 : index
      %c0_11 = arith.constant 0 : index
      %16 = vector.load %arg7[%c0_10, %c0_11] : memref<16x128xf32, #tpu.memory_space<vmem>>, vector<16x128xf32>
      tpu.vector_store %arg7[%c0_10, %c0_11], %15 {strides = array<i32>} : memref<16x128xf32, #tpu.memory_space<vmem>>, vector<16x128xf32>,
    } else {
    }
    %c128_i32 = arith.constant 128 : i32
    %3 = arith.muli %arg1, %c128_i32 : i32
    %4 = tpu.assume_multiple %3, 128 : i32
    %c0 = arith.constant 0 : index
    %c0_1 = arith.constant 0 : index
    %5 = vector.load %arg7[%c0, %c0_1] : memref<16x128xf32, #tpu.memory_space<vmem>>, vector<16x128xf32>
    %c0_2 = arith.constant 0 : index
    %c0_3 = arith.constant 0 : index
    %6 = vector.load %arg2[%c0_2, %c0_3] : memref<16x128xbf16, #tpu.memory_space<vmem>>, vector<16x128xbf16>
    %7 = arith.index_cast %4 : i32 to index
    %c0_4 = arith.constant 0 : index
    %8 = vector.load %arg3[%7, %c0_4] : memref<128x128xbf16, #tpu.memory_space<vmem>>, vector<128x128xbf16>
    %cst = arith.constant dense<0.000000e+00> : vector<16x128xf32>
    %9 = tpu.matmul %6, %8, %cst {dimension_numbers = #tpu.dot_dimension_numbers<[1], [0], [0], [1], [0, 0, 1, 1], [], []>} : vector<16x128xbf16>, vector<128x128xbf16>, vector<16x128xf32> -> vector<16x128xf32>
    %10 = arith.addf %5, %9 : vector<16x128xf32>
    %c0_5 = arith.constant 0 : index
    %c0_6 = arith.constant 0 : index
    %11 = vector.load %arg7[%c0_5, %c0_6] : memref<16x128xf32, #tpu.memory_space<vmem>>, vector<16x128xf32>
    tpu.vector_store %arg7[%c0_5, %c0_6], %10 {strides = array<i32>} : memref<16x128xf32, #tpu.memory_space<vmem>>, vector<16x128xf32>,
    %c0_i32_7 = arith.constant 0 : i32
    %12 = arith.cmpi eq, %arg1, %c0_i32_7 : i32
    %13 = arith.extui %12 : i1 to i32
    %c0_i32_8 = arith.constant 0 : i32
    %14 = arith.cmpi ne, %13, %c0_i32_8 : i32
    scf.if %14 {
      %c16_i32 = arith.constant 16 : i32
      %15 = arith.muli %arg0, %c16_i32 : i32
      %16 = tpu.assume_multiple %15, 16 : i32
      %17 = arith.index_cast %16 : i32 to index
      %c0_9 = arith.constant 0 : index
      %18 = vector.load %arg3[%17, %c0_9] : memref<128x128xbf16, #tpu.memory_space<vmem>>, vector<16x128xbf16>
      %c0_10 = arith.constant 0 : index
      %c0_11 = arith.constant 0 : index
      %c0_12 = arith.constant 0 : index
      %19 = vector.load %arg4[%c0_10, %c0_11, %c0_12] : memref<2x128x128xbf16, #tpu.memory_space<vmem>>, vector<1x128x128xbf16>
      %20 = vector.shape_cast %19 : vector<1x128x128xbf16> to vector<128x128xbf16>
      %cst_13 = arith.constant dense<0.000000e+00> : vector<16x128xf32>
      %21 = tpu.matmul %18, %20, %cst_13 {dimension_numbers = #tpu.dot_dimension_numbers<[1], [0], [0], [1], [0, 0, 1, 1], [], []>} : vector<16x128xbf16>, vector<128x128xbf16>, vector<16x128xf32> -> vector<16x128xf32>
      %c0_14 = arith.constant 0 : index
      %c0_15 = arith.constant 0 : index
      %22 = vector.load %arg7[%c0_14, %c0_15] : memref<16x128xf32, #tpu.memory_space<vmem>>, vector<16x128xf32>
      %23 = arith.truncf %22 : vector<16x128xf32> to vector<16x128xbf16>
      %c1 = arith.constant 1 : index
      %c0_16 = arith.constant 0 : index
      %c0_17 = arith.constant 0 : index
      %24 = vector.load %arg4[%c1, %c0_16, %c0_17] : memref<2x128x128xbf16, #tpu.memory_space<vmem>>, vector<1x128x128xbf16>
      %25 = vector.shape_cast %24 : vector<1x128x128xbf16> to vector<128x128xbf16>
      %cst_18 = arith.constant dense<0.000000e+00> : vector<16x128xf32>
      %26 = tpu.matmul %23, %25, %cst_18 {dimension_numbers = #tpu.dot_dimension_numbers<[1], [0], [0], [1], [0, 0, 1, 1], [], []>} : vector<16x128xbf16>, vector<128x128xbf16>, vector<16x128xf32> -> vector<16x128xf32>
      %27 = arith.addf %21, %26 : vector<16x128xf32>
      %c0_19 = arith.constant 0 : index
      %c0_20 = arith.constant 0 : index
      %28 = vector.load %arg5[%c0_19, %c0_20] : memref<1x128xf32, #tpu.memory_space<vmem>>, vector<1x128xf32>
      %29 = vector.broadcast %28 : vector<1x128xf32> to vector<16x128xf32>
      %30 = arith.addf %27, %29 : vector<16x128xf32>
      %cst_21 = arith.constant 0.000000e+00 : f32
      %31 = vector.broadcast %cst_21 : f32 to vector<16x128xf32>
      %32 = arith.maximumf %30, %31 : vector<16x128xf32>
      %33 = arith.truncf %32 : vector<16x128xf32> to vector<16x128xbf16>
      %c0_22 = arith.constant 0 : index
      %c0_23 = arith.constant 0 : index
      %34 = vector.load %arg6[%c0_22, %c0_23] : memref<16x128xbf16, #tpu.memory_space<vmem>>, vector<16x128xbf16>
      tpu.vector_store %arg6[%c0_22, %c0_23], %33 {strides = array<i32>} : memref<16x128xbf16, #tpu.memory_space<vmem>>, vector<16x128xbf16>,
    } else {
    }
    return
  }
  func.func @transform_0(%arg0: i32, %arg1: i32) -> (i32, i32) {
    %c0_i32 = arith.constant 0 : i32
    return %arg0, %arg1 : i32, i32
  }
  func.func @transform_1(%arg0: i32, %arg1: i32) -> (i32, i32) {
    %c0_i32 = arith.constant 0 : i32
    %c0_i32_0 = arith.constant 0 : i32
    %c0_i32_1 = arith.constant 0 : i32
    return %c0_i32, %c0_i32_0 : i32, i32
  }
  func.func @transform_2(%arg0: i32, %arg1: i32) -> (i32, i32, i32) {
    %c0_i32 = arith.constant 0 : i32
    %c0_i32_0 = arith.constant 0 : i32
    %c0_i32_1 = arith.constant 0 : i32
    %c0_i32_2 = arith.constant 0 : i32
    return %c0_i32, %c0_i32_0, %c0_i32_1 : i32, i32, i32
  }
  func.func @transform_3(%arg0: i32, %arg1: i32) -> (i32, i32) {
    %c0_i32 = arith.constant 0 : i32
    %c0_i32_0 = arith.constant 0 : i32
    %c0_i32_1 = arith.constant 0 : i32
    return %c0_i32, %c0_i32_0 : i32, i32
  }
  func.func @transform_4(%arg0: i32, %arg1: i32) -> (i32, i32) {
    %c0_i32 = arith.constant 0 : i32
    %c0_i32_0 = arith.constant 0 : i32
    return %arg0, %c0_i32 : i32, i32
  }
}

module attributes {stable_mosaic.version = 11 : i64} {
  func.func @_sage_kernel_resident(%arg0: i32, %arg1: i32, %arg2: memref<16x128xbf16, #tpu.memory_space<vmem>>, %arg3: memref<128x128xbf16, #tpu.memory_space<vmem>>, %arg4: memref<2x128x128xbf16, #tpu.memory_space<vmem>>, %arg5: memref<1x128xf32, #tpu.memory_space<vmem>>, %arg6: memref<16x128xf32, #tpu.memory_space<vmem>>, %arg7: memref<16x128xf32, #tpu.memory_space<vmem>>) attributes {dimension_semantics = [#tpu.dimension_semantics<parallel>, #tpu.dimension_semantics<arbitrary>], iteration_bounds = array<i64: 1, 1>, scalar_prefetch = 0 : i64, scratch_operands = 1 : i64, tpu.core_type = #tpu.core_type<tc>, window_params = [{transform_indices = @transform_0, window_bounds = array<i64: 16, 128>}, {pipeline_mode = #tpu.pipeline_mode<synchronous>, transform_indices = @transform_1, window_bounds = array<i64: 128, 128>}, {pipeline_mode = #tpu.pipeline_mode<synchronous>, transform_indices = @transform_2, window_bounds = array<i64: 2, 128, 128>}, {pipeline_mode = #tpu.pipeline_mode<synchronous>, transform_indices = @transform_3, window_bounds = array<i64: 1, 128>}, {transform_indices = @transform_4, window_bounds = array<i64: 16, 128>}]} {
    %c0_i32 = arith.constant 0 : i32
    %0 = arith.cmpi eq, %arg1, %c0_i32 : i32
    %1 = arith.extui %0 : i1 to i32
    %c0_i32_0 = arith.constant 0 : i32
    %2 = arith.cmpi ne, %1, %c0_i32_0 : i32
    scf.if %2 {
      %cst_9 = arith.constant 0.000000e+00 : f32
      %15 = vector.broadcast %cst_9 : f32 to vector<16x128xf32>
      %c0_10 = arith.constant 0 : index
      %c0_11 = arith.constant 0 : index
      %16 = vector.load %arg7[%c0_10, %c0_11] : memref<16x128xf32, #tpu.memory_space<vmem>>, vector<16x128xf32>
      tpu.vector_store %arg7[%c0_10, %c0_11], %15 {strides = array<i32>} : memref<16x128xf32, #tpu.memory_space<vmem>>, vector<16x128xf32>,
    } else {
    }
    %c128_i32 = arith.constant 128 : i32
    %3 = arith.muli %arg1, %c128_i32 : i32
    %4 = tpu.assume_multiple %3, 128 : i32
    %c0 = arith.constant 0 : index
    %c0_1 = arith.constant 0 : index
    %5 = vector.load %arg7[%c0, %c0_1] : memref<16x128xf32, #tpu.memory_space<vmem>>, vector<16x128xf32>
    %c0_2 = arith.constant 0 : index
    %c0_3 = arith.constant 0 : index
    %6 = vector.load %arg2[%c0_2, %c0_3] : memref<16x128xbf16, #tpu.memory_space<vmem>>, vector<16x128xbf16>
    %7 = arith.index_cast %4 : i32 to index
    %c0_4 = arith.constant 0 : index
    %8 = vector.load %arg3[%7, %c0_4] : memref<128x128xbf16, #tpu.memory_space<vmem>>, vector<128x128xbf16>
    %cst = arith.constant dense<0.000000e+00> : vector<16x128xf32>
    %9 = tpu.matmul %6, %8, %cst {dimension_numbers = #tpu.dot_dimension_numbers<[1], [0], [0], [1], [0, 0, 1, 1], [], []>} : vector<16x128xbf16>, vector<128x128xbf16>, vector<16x128xf32> -> vector<16x128xf32>
    %10 = arith.addf %5, %9 : vector<16x128xf32>
    %c0_5 = arith.constant 0 : index
    %c0_6 = arith.constant 0 : index
    %11 = vector.load %arg7[%c0_5, %c0_6] : memref<16x128xf32, #tpu.memory_space<vmem>>, vector<16x128xf32>
    tpu.vector_store %arg7[%c0_5, %c0_6], %10 {strides = array<i32>} : memref<16x128xf32, #tpu.memory_space<vmem>>, vector<16x128xf32>,
    %c0_i32_7 = arith.constant 0 : i32
    %12 = arith.cmpi eq, %arg1, %c0_i32_7 : i32
    %13 = arith.extui %12 : i1 to i32
    %c0_i32_8 = arith.constant 0 : i32
    %14 = arith.cmpi ne, %13, %c0_i32_8 : i32
    scf.if %14 {
      %c16_i32 = arith.constant 16 : i32
      %15 = arith.muli %arg0, %c16_i32 : i32
      %16 = tpu.assume_multiple %15, 16 : i32
      %17 = arith.index_cast %16 : i32 to index
      %c0_9 = arith.constant 0 : index
      %18 = vector.load %arg3[%17, %c0_9] : memref<128x128xbf16, #tpu.memory_space<vmem>>, vector<16x128xbf16>
      %c0_10 = arith.constant 0 : index
      %c0_11 = arith.constant 0 : index
      %c0_12 = arith.constant 0 : index
      %19 = vector.load %arg4[%c0_10, %c0_11, %c0_12] : memref<2x128x128xbf16, #tpu.memory_space<vmem>>, vector<1x128x128xbf16>
      %20 = vector.shape_cast %19 : vector<1x128x128xbf16> to vector<128x128xbf16>
      %cst_13 = arith.constant dense<0.000000e+00> : vector<16x128xf32>
      %21 = tpu.matmul %18, %20, %cst_13 {dimension_numbers = #tpu.dot_dimension_numbers<[1], [0], [0], [1], [0, 0, 1, 1], [], []>} : vector<16x128xbf16>, vector<128x128xbf16>, vector<16x128xf32> -> vector<16x128xf32>
      %c0_14 = arith.constant 0 : index
      %c0_15 = arith.constant 0 : index
      %22 = vector.load %arg7[%c0_14, %c0_15] : memref<16x128xf32, #tpu.memory_space<vmem>>, vector<16x128xf32>
      %23 = arith.truncf %22 : vector<16x128xf32> to vector<16x128xbf16>
      %c1 = arith.constant 1 : index
      %c0_16 = arith.constant 0 : index
      %c0_17 = arith.constant 0 : index
      %24 = vector.load %arg4[%c1, %c0_16, %c0_17] : memref<2x128x128xbf16, #tpu.memory_space<vmem>>, vector<1x128x128xbf16>
      %25 = vector.shape_cast %24 : vector<1x128x128xbf16> to vector<128x128xbf16>
      %cst_18 = arith.constant dense<0.000000e+00> : vector<16x128xf32>
      %26 = tpu.matmul %23, %25, %cst_18 {dimension_numbers = #tpu.dot_dimension_numbers<[1], [0], [0], [1], [0, 0, 1, 1], [], []>} : vector<16x128xbf16>, vector<128x128xbf16>, vector<16x128xf32> -> vector<16x128xf32>
      %27 = arith.addf %21, %26 : vector<16x128xf32>
      %c0_19 = arith.constant 0 : index
      %c0_20 = arith.constant 0 : index
      %28 = vector.load %arg5[%c0_19, %c0_20] : memref<1x128xf32, #tpu.memory_space<vmem>>, vector<1x128xf32>
      %29 = vector.broadcast %28 : vector<1x128xf32> to vector<16x128xf32>
      %30 = arith.addf %27, %29 : vector<16x128xf32>
      %cst_21 = arith.constant dense<0xFF800000> : vector<16xf32>
      %31 = vector.multi_reduction <maximumf>, %30, %cst_21 [1] : vector<16x128xf32> to vector<16xf32>
      %32 = vector.shape_cast %31 : vector<16xf32> to vector<16x1xf32>
      %33 = vector.broadcast %32 : vector<16x1xf32> to vector<16x128xf32>
      %34 = arith.subf %30, %33 : vector<16x128xf32>
      %35 = math.exp %34 : vector<16x128xf32>
      %cst_22 = arith.constant dense<0.000000e+00> : vector<16xf32>
      %36 = vector.multi_reduction <add>, %35, %cst_22 [1] : vector<16x128xf32> to vector<16xf32>
      %37 = vector.shape_cast %36 : vector<16xf32> to vector<16x1xf32>
      %38 = math.log %37 : vector<16x1xf32>
      %39 = vector.broadcast %38 : vector<16x1xf32> to vector<16x128xf32>
      %40 = arith.subf %34, %39 : vector<16x128xf32>
      %c0_23 = arith.constant 0 : index
      %c0_24 = arith.constant 0 : index
      %41 = vector.load %arg6[%c0_23, %c0_24] : memref<16x128xf32, #tpu.memory_space<vmem>>, vector<16x128xf32>
      tpu.vector_store %arg6[%c0_23, %c0_24], %40 {strides = array<i32>} : memref<16x128xf32, #tpu.memory_space<vmem>>, vector<16x128xf32>,
    } else {
    }
    return
  }
  func.func @transform_0(%arg0: i32, %arg1: i32) -> (i32, i32) {
    %c0_i32 = arith.constant 0 : i32
    return %arg0, %arg1 : i32, i32
  }
  func.func @transform_1(%arg0: i32, %arg1: i32) -> (i32, i32) {
    %c0_i32 = arith.constant 0 : i32
    %c0_i32_0 = arith.constant 0 : i32
    %c0_i32_1 = arith.constant 0 : i32
    return %c0_i32, %c0_i32_0 : i32, i32
  }
  func.func @transform_2(%arg0: i32, %arg1: i32) -> (i32, i32, i32) {
    %c0_i32 = arith.constant 0 : i32
    %c0_i32_0 = arith.constant 0 : i32
    %c0_i32_1 = arith.constant 0 : i32
    %c0_i32_2 = arith.constant 0 : i32
    return %c0_i32, %c0_i32_0, %c0_i32_1 : i32, i32, i32
  }
  func.func @transform_3(%arg0: i32, %arg1: i32) -> (i32, i32) {
    %c0_i32 = arith.constant 0 : i32
    %c0_i32_0 = arith.constant 0 : i32
    %c0_i32_1 = arith.constant 0 : i32
    return %c0_i32, %c0_i32_0 : i32, i32
  }
  func.func @transform_4(%arg0: i32, %arg1: i32) -> (i32, i32) {
    %c0_i32 = arith.constant 0 : i32
    %c0_i32_0 = arith.constant 0 : i32
    return %arg0, %c0_i32 : i32, i32
  }
}

</mosaic_0001>

<llo_original>
// kernel: tpu_custom_call.1
$region0: #{tpu_custom_call.1}
  #allocation0 [shape = 'u32[]', space=smem, size = 0x4, offset = 0x4, fixed_abs, tag = 'smem constant byte address 0x4 - core index']
  #allocation1 [shape = 'u32[144,128]{1,0:T(1,128)}', space=vmem, size = 0x12000, scoped, tag = 'internal scratch']
  %s0 = inlined_call_operand.hbm [shape: f32[8,128], index: 0, kind: input, shape index: {}]
  %s1 = inlined_call_operand.hbm [shape: f32[8,128], index: 1, kind: output, shape index: {}]
  %s2 = sld [smem:[#allocation0]]
  $region41: #{tpu_custom_call.1} parent=0
    _
  %s4 = ssub.s32 1, %s2
  %s5 = scalar_select 0, %s4, %s2
  $region1: #{tpu_custom_call.1} parent=0
    #allocation2 [shape = 'u8[4096]{0}', space=vmem, size = 0x1000, scoped, tag = 'input window, operand 0, single buffered']
    #allocation3 [shape = 's32[2]{0}', space=sflag, size = 0x8, scoped, tag = 'scoped memory for tpu_custom_call.1']
    #allocation4 [shape = 's32[2]{0}', space=sflag, size = 0x8, scoped, tag = 'scoped memory for tpu_custom_call.1']
    #allocation5 [shape = 'u8[4096]{0}', space=vmem, size = 0x1000, scoped, tag = 'output window, operand 0, single buffered']
    %6 = vsyncpa [#allocation3], 0
    %7 = vsyncpa [#allocation4], 0
    loop: start=0, step=1, limit=4
    $region2: #{tpu_custom_call.1} parent=1 // loop_pre_header
      _
    $region3: #{tpu_custom_call.1} parent=1 // loop_header
      %s9 = sphi 0, %s13
      %p10 = scmp.ge.s32.totalorder %s9, 4
      %s17 = sphi 0, %s17
      %s19 = sphi 0, %s17
      %s20 = sphi 0, %s19
      %s34 = sphi 0, %s20
      %s38 = sphi 0, %s38
      %s40 = sphi 0, %s38
      %s41 = sphi 0, %s40
      %s55 = sphi 0, %s41
    $region4: #{tpu_custom_call.1} parent=1 // loop_header_branch
      %12 = sbr.rel (%p10) target = $region8
    $region5: #{tpu_custom_call.1} parent=1 // loop_body
      %s14 = ssub.s32 %s9, 1
      %s15 = ssub.s32 %s9, 2
      %s16 = sadd.s32 %s9, 1
      %s18 = sadd.s32 %s17, 1
      %p21 = scmp.eq.s32.totalorder %s9, 1
      %p22 = scmp.ne.s32.totalorder %s17, %s19
      %p23 = scmp.eq.s32.totalorder %s9, 0
      %p24 = por %p22, %p23
      %p25 = scmp.ne.s32.totalorder %s17, %s19
      %p26 = scmp.eq.s32.totalorder %s14, 1
      %p27 = por %p25, %p26
      %p28 = scmp.ne.s32.totalorder %s19, %s20
      %p29 = scmp.eq.s32.totalorder %s14, 0
      %p30 = por %p28, %p29
      %p31 = scmp.ne.s32.totalorder %s19, %s20
      %p32 = scmp.eq.s32.totalorder %s15, 1
      %p33 = por %p31, %p32
      %p35 = scmp.ne.s32.totalorder %s20, %s34
      %p36 = scmp.eq.s32.totalorder %s15, 0
      %p37 = por %p35, %p36
      %s39 = sadd.s32 %s38, 1
      %p42 = scmp.eq.s32.totalorder %s9, 1
      %p43 = scmp.ne.s32.totalorder %s38, %s40
      %p44 = scmp.eq.s32.totalorder %s9, 0
      %p45 = por %p43, %p44
      %p46 = scmp.ne.s32.totalorder %s38, %s40
      %p47 = scmp.eq.s32.totalorder %s14, 1
      %p48 = por %p46, %p47
      %p49 = scmp.ne.s32.totalorder %s40, %s41
      %p50 = scmp.eq.s32.totalorder %s14, 0
      %p51 = por %p49, %p50
      %p52 = scmp.ne.s32.totalorder %s40, %s41
      %p53 = scmp.eq.s32.totalorder %s15, 1
      %p54 = por %p52, %p53
      %p56 = scmp.ne.s32.totalorder %s41, %s55
      %p57 = scmp.eq.s32.totalorder %s15, 0
      %p58 = por %p56, %p57
      %p59 = scmp.le.s32.totalorder 1, %s9
      %p60 = scmp.lt.s32.totalorder %s9, 3
      %p61 = pnand %p59, %p60
      %p62 = pneg %p61
      // Predicated region
      $region9: #{tpu_custom_call.1} parent=5 // pred_check
        _
      $region10: #{tpu_custom_call.1} parent=5 // pred_check_branch
        %64 = sbr.rel (%p61) target = $region12
      $region11: #{tpu_custom_call.1} parent=5 // pred_region
        %s65 = ssub.s32 %s9, 1
        // Predicated region
        $region13: #{tpu_custom_call.1} parent=11 // pred_check
          %p66 = pneg %p30
        $region14: #{tpu_custom_call.1} parent=11 // pred_check_branch
          %68 = sbr.rel (%p66) target = $region16
        $region15: #{tpu_custom_call.1} parent=11 // pred_region
          %s70 = ssub.s32 128, 128
          %71 = vsyncadd [#allocation3], %s70
          %s73 = sshll.u32 [#allocation2], 4
          %s74 = int_to_ptr.vmem [resolvable:$true] %s73
          %76 = dma.hbm_to_vmem [thread:$0]  %s0, 128, %s74, [#allocation3]
        $region16: #{tpu_custom_call.1} parent=11 // pred_fallthru
          _
      $region12: #{tpu_custom_call.1} parent=5 // pred_fallthru
        _
      %p77 = scmp.lt.s32.totalorder %s9, 2
      // Predicated region
      $region17: #{tpu_custom_call.1} parent=5 // pred_check
        %p78 = pneg %p77
      $region18: #{tpu_custom_call.1} parent=5 // pred_check_branch
        %80 = sbr.rel (%p78) target = $region20
      $region19: #{tpu_custom_call.1} parent=5 // pred_region
        _
      $region20: #{tpu_custom_call.1} parent=5 // pred_fallthru
        _
      %p81 = scmp.le.s32.totalorder 1, %s9
      %p82 = scmp.lt.s32.totalorder %s9, 3
      %p83 = pnand %p81, %p82
      %p84 = pneg %p83
      // Predicated region
      $region21: #{tpu_custom_call.1} parent=5 // pred_check
        _
      $region22: #{tpu_custom_call.1} parent=5 // pred_check_branch
        %86 = sbr.rel (%p83) target = $region24
      $region23: #{tpu_custom_call.1} parent=5 // pred_region
        %s87 = ssub.s32 %s9, 1
        // Predicated region
        $region25: #{tpu_custom_call.1} parent=23 // pred_check
          %p88 = pneg %p30
        $region26: #{tpu_custom_call.1} parent=23 // pred_check_branch
          %90 = sbr.rel (%p88) target = $region28
        $region27: #{tpu_custom_call.1} parent=23 // pred_region
          %91 = dma.done [#allocation3], 128
        $region28: #{tpu_custom_call.1} parent=23 // pred_fallthru
          _
        %p92 = pneg %p30
        %p93 = pneg %p27
        %p94 = pneg %p51
        %p95 = pneg %p48
        %v96 = vld [vmem:[#allocation2] sm:$0xff]
        %v97 = vadd.f32 %v96, 1.0
        %98 = vst [vmem:[#allocation5] sm:$0xff] %v97
        // Predicated region
        $region29: #{tpu_custom_call.1} parent=23 // pred_check
          %p99 = pneg %p48
        $region30: #{tpu_custom_call.1} parent=23 // pred_check_branch
          %101 = sbr.rel (%p99) target = $region32
        $region31: #{tpu_custom_call.1} parent=23 // pred_region
          %s103 = ssub.s32 128, 128
          %104 = vsyncadd [#allocation4], %s103
          %s106 = sshll.u32 [#allocation5], 4
          %s107 = int_to_ptr.vmem [resolvable:$true] %s106
          %109 = dma.vmem_to_hbm [thread:$0]  %s107, 128, %s1, [#allocation4]
        $region32: #{tpu_custom_call.1} parent=23 // pred_fallthru
          _
        // Predicated region
        $region33: #{tpu_custom_call.1} parent=23 // pred_check
          %p110 = pneg %p48
        $region34: #{tpu_custom_call.1} parent=23 // pred_check_branch
          %112 = sbr.rel (%p110) target = $region36
        $region35: #{tpu_custom_call.1} parent=23 // pred_region
          %113 = dma.done [#allocation4], 128
        $region36: #{tpu_custom_call.1} parent=23 // pred_fallthru
          _
      $region24: #{tpu_custom_call.1} parent=5 // pred_fallthru
        _
      %p114 = scmp.le.s32.totalorder 2, %s9
      // Predicated region
      $region37: #{tpu_custom_call.1} parent=5 // pred_check
        %p115 = pneg %p114
      $region38: #{tpu_custom_call.1} parent=5 // pred_check_branch
        %117 = sbr.rel (%p115) target = $region40
      $region39: #{tpu_custom_call.1} parent=5 // pred_region
        %s118 = ssub.s32 %s9, 2
      $region40: #{tpu_custom_call.1} parent=5 // pred_fallthru
        _
    $region6: #{tpu_custom_call.1} parent=1 // loop_footer
      %s13 = sadd.s32 1, %s9
    $region7: #{tpu_custom_call.1} parent=1 // loop_footer_branch
      %8 = sbr.rel target = $region3
    $region8: #{tpu_custom_call.1} parent=1 // loop_exit
      _
    %119 = vsyncpa [#allocation3], 1
    %s120 = scalar_lea.sflag [#allocation3], 1
    %121 = vsyncpa %s120, 1
    %122 = vsyncpa [#allocation4], 1
    %s123 = scalar_lea.sflag [#allocation4], 1
    %124 = vsyncpa %s123, 1

// kernel: graphsage_forward.4
$region0: #{graphsage_forward.4}
  #allocation0 [shape = 'u32[]', space=smem, size = 0x4, offset = 0x4, fixed_abs, tag = 'smem constant byte address 0x4 - core index']
  #allocation1 [shape = 'u32[144,128]{1,0:T(1,128)}', space=vmem, size = 0x12000, scoped, tag = 'internal scratch']
  #allocation2 [shape = 'f32[16,128]{1,0:T(8,128)}', space=vmem, size = 0x2000, scoped, tag = 'scratch operand']
  %s0 = inlined_call_operand.vmem [shape: bf16[16,128], index: 0, kind: input, shape index: {}]
  %s1 = inlined_call_operand.vmem [shape: bf16[128,128], index: 1, kind: input, shape index: {}]
  %s2 = inlined_call_operand.vmem [shape: bf16[2,128,128], index: 2, kind: input, shape index: {}]
  %s3 = inlined_call_operand.vmem [shape: f32[1,128], index: 3, kind: input, shape index: {}]
  %s4 = inlined_call_operand.vmem [shape: bf16[16,128], index: 4, kind: output, shape index: {}]
  %s5 = sld [smem:[#allocation0]]
  $region34: #{graphsage_forward.4} parent=0
    _
  %s7 = ssub.s32 1, %s5
  %s8 = scalar_select 0, %s7, %s5
  // Predicated region
  $region2: #{graphsage_forward.4} parent=0 // pred_check
    _
  $region3: #{graphsage_forward.4} parent=0 // pred_check_branch
    %10 = sbr.rel (0) target = $region5
  $region4: #{graphsage_forward.4} parent=0 // pred_region
    _
  $region5: #{graphsage_forward.4} parent=0 // pred_fallthru
    _
  // Predicated region
  $region6: #{graphsage_forward.4} parent=0 // pred_check
    _
  $region7: #{graphsage_forward.4} parent=0 // pred_check_branch
    %12 = sbr.rel (0) target = $region9
  $region8: #{graphsage_forward.4} parent=0 // pred_region
    _
  $region9: #{graphsage_forward.4} parent=0 // pred_fallthru
    _
  // Predicated region
  $region10: #{graphsage_forward.4} parent=0 // pred_check
    _
  $region11: #{graphsage_forward.4} parent=0 // pred_check_branch
    %14 = sbr.rel (0) target = $region13
  $region12: #{graphsage_forward.4} parent=0 // pred_region
    _
  $region13: #{graphsage_forward.4} parent=0 // pred_fallthru
    _
  // Predicated region
  $region14: #{graphsage_forward.4} parent=0 // pred_check
    _
  $region15: #{graphsage_forward.4} parent=0 // pred_check_branch
    %16 = sbr.rel (0) target = $region17
  $region16: #{graphsage_forward.4} parent=0 // pred_region
    _
  $region17: #{graphsage_forward.4} parent=0 // pred_fallthru
    _
  %p18 = scmp.eq.s32.totalorder 0, 0
  // Predicated region
  $region18: #{graphsage_forward.4} parent=0 // pred_check
    %p19 = pneg %p18
  $region19: #{graphsage_forward.4} parent=0 // pred_check_branch
    %21 = sbr.rel (%p19) target = $region21
  $region20: #{graphsage_forward.4} parent=0 // pred_region
    %22 = vst [vmem:[#allocation2] sm:$0xff] 0.0
    %23 = vst [vmem:[#allocation2 + $0x8] sm:$0xff] 0.0
  $region21: #{graphsage_forward.4} parent=0 // pred_fallthru
    _
  %s24 = smul.u32 0, 128
  %v25 = vld [vmem:[#allocation2] sm:$0xff]
  %v26 = vld [vmem:[#allocation2 + $0x8] sm:$0xff]
  %v27 = vld [vmem:[%s0] sm:$0xf]
  %v28 = vld [vmem:[%s0 + $0x4] sm:$0xf]
  %s29 = sshra.s32 %s24, 3
  %s30 = sand.u32 %s24, 7
  %s31 = smul.addr %s29, 4
  %s32 = scalar_lea.vmem %s1, %s31
  %v33 = vld [vmem:[%s32] sm:$0xf]
  %v34 = vld [vmem:[%s32 + $0x4] sm:$0xf]
  %v35 = vld [vmem:[%s32 + $0x8] sm:$0xf]
  %v36 = vld [vmem:[%s32 + $0xc] sm:$0xf]
  %v37 = vld [vmem:[%s32 + $0x10] sm:$0xf]
  %v38 = vld [vmem:[%s32 + $0x14] sm:$0xf]
  %v39 = vld [vmem:[%s32 + $0x18] sm:$0xf]
  %v40 = vld [vmem:[%s32 + $0x1c] sm:$0xf]
  %v41 = vld [vmem:[%s32 + $0x20] sm:$0xf]
  %v42 = vld [vmem:[%s32 + $0x24] sm:$0xf]
  %v43 = vld [vmem:[%s32 + $0x28] sm:$0xf]
  %v44 = vld [vmem:[%s32 + $0x2c] sm:$0xf]
  %v45 = vld [vmem:[%s32 + $0x30] sm:$0xf]
  %v46 = vld [vmem:[%s32 + $0x34] sm:$0xf]
  %v47 = vld [vmem:[%s32 + $0x38] sm:$0xf]
  %v48 = vld [vmem:[%s32 + $0x3c] sm:$0xf]
  %v51 = vunpack.c.l.b16 %v27
  %v52 = vunpack.c.l.b16 %v28
  %v53 = vpack.c.b16 %v52, %v51
  %v71 = vunpack.c.l.b16 %v33
  %v72 = vunpack.c.l.b16 %v34
  %v73 = vunpack.c.l.b16 %v35
  %v74 = vunpack.c.l.b16 %v36
  %v75 = vunpack.c.l.b16 %v37
  %v76 = vunpack.c.l.b16 %v38
  %v77 = vunpack.c.l.b16 %v39
  %v78 = vunpack.c.l.b16 %v40
  %v79 = vunpack.c.l.b16 %v41
  %v80 = vunpack.c.l.b16 %v42
  %v81 = vunpack.c.l.b16 %v43
  %v82 = vunpack.c.l.b16 %v44
  %v83 = vunpack.c.l.b16 %v45
  %v84 = vunpack.c.l.b16 %v46
  %v85 = vunpack.c.l.b16 %v47
  %v86 = vunpack.c.l.b16 %v48
  %v87 = vpack.c.b16 %v72, %v71
  %v88 = vpack.c.b16 %v74, %v73
  %v89 = vpack.c.b16 %v76, %v75
  %v90 = vpack.c.b16 %v78, %v77
  %v91 = vpack.c.b16 %v80, %v79
  %v92 = vpack.c.b16 %v82, %v81
  %v93 = vpack.c.b16 %v84, %v83
  %v94 = vpack.c.b16 %v86, %v85
  %103 = vmatprep.subr.bf16.mxu0 0
  %104 = vmatpush1.bf16.msra.mxu0 %v94
  %105 = vmatprep.subr.bf16.mxu0 0
  %106 = vmatpush1.bf16.msra.mxu0 %v93
  %107 = vmatprep.subr.bf16.mxu0 0
  %108 = vmatpush1.bf16.msra.mxu0 %v92
  %109 = vmatprep.subr.bf16.mxu0 0
  %110 = vmatpush1.bf16.msra.mxu0 %v91
  %111 = vmatprep.subr.bf16.mxu0 0
  %112 = vmatpush1.bf16.msra.mxu0 %v90
  %113 = vmatprep.subr.bf16.mxu0 0
  %114 = vmatpush1.bf16.msra.mxu0 %v89
  %115 = vmatprep.subr.bf16.mxu0 0
  %116 = vmatpush1.bf16.msra.mxu0 %v88
  %117 = vmatprep.subr.bf16.mxu0 0
  %118 = vmatpush1.bf16.msra.mxu0 %v87
  %119 = vmatprep.subr.bf16.mxu0 0
  %120 = vmatpush2.bf16.msra.mxu0 0
  %121 = vmatprep.subr.bf16.mxu0 0
  %122 = vmatpush2.bf16.msra.mxu0 0
  %123 = vmatprep.subr.bf16.mxu0 0
  %124 = vmatpush2.bf16.msra.mxu0 0
  %125 = vmatprep.subr.bf16.mxu0 0
  %126 = vmatpush2.bf16.msra.mxu0 0
  %127 = vmatprep.subr.bf16.mxu0 0
  %128 = vmatpush2.bf16.msra.mxu0 0
  %129 = vmatprep.subr.bf16.mxu0 0
  %130 = vmatpush2.bf16.msra.mxu0 0
  %131 = vmatprep.subr.bf16.mxu0 0
  %132 = vmatpush2.bf16.msra.mxu0 0
  %133 = vmatprep.subr.bf16.mxu0 0
  %134 = vmatpush2.bf16.msra.mxu0 0
  %135 = vmatprep.mubr.bf16.mxu0 0
  %136 = vmatmul.mubr.bf16.gmra.mxu0 %v53
  %v137 = vpop.f32.mrf.mxu0
  %v138 = vadd.f32 0.0, %v137
  %v139 = vpop.f32.mrf.mxu0
  %v140 = vpop.f32.mrf.mxu0
  %v141 = vadd.f32 0.0, %v140
  %v142 = vpop.f32.mrf.mxu0
  %143 = vdwg.mxu0
  %v144 = vadd.f32 %v25, %v138
  %v145 = vadd.f32 %v26, %v141
  %146 = vst [vmem:[#allocation2] sm:$0xff] %v144
  %147 = vst [vmem:[#allocation2 + $0x8] sm:$0xff] %v145
  // Predicated region
  $region22: #{graphsage_forward.4} parent=0 // pred_check
    %p148 = pneg %p18
  $region23: #{graphsage_forward.4} parent=0 // pred_check_branch
    %150 = sbr.rel (%p148) target = $region25
  $region24: #{graphsage_forward.4} parent=0 // pred_region
    %s151 = smul.u32 0, 16
    %s152 = sshra.s32 %s151, 3
    %s153 = sand.u32 %s151, 7
    %s154 = smul.addr %s152, 4
    %s155 = scalar_lea.vmem %s1, %s154
    %v156 = vld [vmem:[%s155] sm:$0xf]
    %v157 = vld [vmem:[%s155 + $0x4] sm:$0xf]
    %v158 = vld [vmem:[%s2] sm:$0xf]
    %v159 = vld [vmem:[%s2 + $0x4] sm:$0xf]
    %v160 = vld [vmem:[%s2 + $0x8] sm:$0xf]
    %v161 = vld [vmem:[%s2 + $0xc] sm:$0xf]
    %v162 = vld [vmem:[%s2 + $0x10] sm:$0xf]
    %v163 = vld [vmem:[%s2 + $0x14] sm:$0xf]
    %v164 = vld [vmem:[%s2 + $0x18] sm:$0xf]
    %v165 = vld [vmem:[%s2 + $0x1c] sm:$0xf]
    %v166 = vld [vmem:[%s2 + $0x20] sm:$0xf]
    %v167 = vld [vmem:[%s2 + $0x24] sm:$0xf]
    %v168 = vld [vmem:[%s2 + $0x28] sm:$0xf]
    %v169 = vld [vmem:[%s2 + $0x2c] sm:$0xf]
    %v170 = vld [vmem:[%s2 + $0x30] sm:$0xf]
    %v171 = vld [vmem:[%s2 + $0x34] sm:$0xf]
    %v172 = vld [vmem:[%s2 + $0x38] sm:$0xf]
    %v173 = vld [vmem:[%s2 + $0x3c] sm:$0xf]
    %v174 = vld [vmem:[#allocation2] sm:$0xff]
    %v175 = vld [vmem:[#allocation2 + $0x8] sm:$0xff]
    %v176 = vpack.c.bf16 %v175, %v174
    %s177 = scalar_lea.vmem %s2, 64
    %v178 = vld [vmem:[%s177] sm:$0xf]
    %v179 = vld [vmem:[%s177 + $0x4] sm:$0xf]
    %v180 = vld [vmem:[%s177 + $0x8] sm:$0xf]
    %v181 = vld [vmem:[%s177 + $0xc] sm:$0xf]
    %v182 = vld [vmem:[%s177 + $0x10] sm:$0xf]
    %v183 = vld [vmem:[%s177 + $0x14] sm:$0xf]
    %v184 = vld [vmem:[%s177 + $0x18] sm:$0xf]
    %v185 = vld [vmem:[%s177 + $0x1c] sm:$0xf]
    %v186 = vld [vmem:[%s177 + $0x20] sm:$0xf]
    %v187 = vld [vmem:[%s177 + $0x24] sm:$0xf]
    %v188 = vld [vmem:[%s177 + $0x28] sm:$0xf]
    %v189 = vld [vmem:[%s177 + $0x2c] sm:$0xf]
    %v190 = vld [vmem:[%s177 + $0x30] sm:$0xf]
    %v191 = vld [vmem:[%s177 + $0x34] sm:$0xf]
    %v192 = vld [vmem:[%s177 + $0x38] sm:$0xf]
    %v193 = vld [vmem:[%s177 + $0x3c] sm:$0xf]
    %v210 = vunpack.c.l.b16 %v178
    %v211 = vunpack.c.l.b16 %v179
    %v212 = vunpack.c.l.b16 %v180
    %v213 = vunpack.c.l.b16 %v181
    %v214 = vunpack.c.l.b16 %v182
    %v215 = vunpack.c.l.b16 %v183
    %v216 = vunpack.c.l.b16 %v184
    %v217 = vunpack.c.l.b16 %v185
    %v218 = vunpack.c.l.b16 %v186
    %v219 = vunpack.c.l.b16 %v187
    %v220 = vunpack.c.l.b16 %v188
    %v221 = vunpack.c.l.b16 %v189
    %v222 = vunpack.c.l.b16 %v190
    %v223 = vunpack.c.l.b16 %v191
    %v224 = vunpack.c.l.b16 %v192
    %v225 = vunpack.c.l.b16 %v193
    %v226 = vpack.c.b16 %v211, %v210
    %v227 = vpack.c.b16 %v213, %v212
    %v228 = vpack.c.b16 %v215, %v214
    %v229 = vpack.c.b16 %v217, %v216
    %v230 = vpack.c.b16 %v219, %v218
    %v231 = vpack.c.b16 %v221, %v220
    %v232 = vpack.c.b16 %v223, %v222
    %v233 = vpack.c.b16 %v225, %v224
    %242 = vmatprep.subr.bf16.mxu0 0
    %243 = vmatpush1.bf16.msra.mxu0 %v233
    %244 = vmatprep.subr.bf16.mxu0 0
    %245 = vmatpush1.bf16.msra.mxu0 %v232
    %246 = vmatprep.subr.bf16.mxu0 0
    %247 = vmatpush1.bf16.msra.mxu0 %v231
    %248 = vmatprep.subr.bf16.mxu0 0
    %249 = vmatpush1.bf16.msra.mxu0 %v230
    %250 = vmatprep.subr.bf16.mxu0 0
    %251 = vmatpush1.bf16.msra.mxu0 %v229
    %252 = vmatprep.subr.bf16.mxu0 0
    %253 = vmatpush1.bf16.msra.mxu0 %v228
    %254 = vmatprep.subr.bf16.mxu0 0
    %255 = vmatpush1.bf16.msra.mxu0 %v227
    %256 = vmatprep.subr.bf16.mxu0 0
    %257 = vmatpush1.bf16.msra.mxu0 %v226
    %258 = vmatprep.subr.bf16.mxu0 0
    %259 = vmatpush2.bf16.msra.mxu0 0
    %260 = vmatprep.subr.bf16.mxu0 0
    %261 = vmatpush2.bf16.msra.mxu0 0
    %262 = vmatprep.subr.bf16.mxu0 0
    %263 = vmatpush2.bf16.msra.mxu0 0
    %264 = vmatprep.subr.bf16.mxu0 0
    %265 = vmatpush2.bf16.msra.mxu0 0
    %266 = vmatprep.subr.bf16.mxu0 0
    %267 = vmatpush2.bf16.msra.mxu0 0
    %268 = vmatprep.subr.bf16.mxu0 0
    %269 = vmatpush2.bf16.msra.mxu0 0
    %270 = vmatprep.subr.bf16.mxu0 0
    %271 = vmatpush2.bf16.msra.mxu0 0
    %272 = vmatprep.subr.bf16.mxu0 0
    %273 = vmatpush2.bf16.msra.mxu0 0
    %274 = vmatprep.mubr.bf16.mxu0 0
    %275 = vmatmul.mubr.bf16.gmra.mxu0 %v176
    %v276 = vpop.f32.mrf.mxu0
    %v277 = vadd.f32 0.0, %v276
    %v278 = vpop.f32.mrf.mxu0
    %v279 = vpop.f32.mrf.mxu0
    %v280 = vadd.f32 0.0, %v279
    %v281 = vpop.f32.mrf.mxu0
    %282 = vdwg.mxu0
    %v285 = vunpack.c.l.b16 %v156
    %v286 = vunpack.c.l.b16 %v157
    %v287 = vpack.c.b16 %v286, %v285
    %v305 = vunpack.c.l.b16 %v158
    %v306 = vunpack.c.l.b16 %v159
    %v307 = vunpack.c.l.b16 %v160
    %v308 = vunpack.c.l.b16 %v161
    %v309 = vunpack.c.l.b16 %v162
    %v310 = vunpack.c.l.b16 %v163
    %v311 = vunpack.c.l.b16 %v164
    %v312 = vunpack.c.l.b16 %v165
    %v313 = vunpack.c.l.b16 %v166
    %v314 = vunpack.c.l.b16 %v167
    %v315 = vunpack.c.l.b16 %v168
    %v316 = vunpack.c.l.b16 %v169
    %v317 = vunpack.c.l.b16 %v170
    %v318 = vunpack.c.l.b16 %v171
    %v319 = vunpack.c.l.b16 %v172
    %v320 = vunpack.c.l.b16 %v173
    %v321 = vpack.c.b16 %v306, %v305
    %v322 = vpack.c.b16 %v308, %v307
    %v323 = vpack.c.b16 %v310, %v309
    %v324 = vpack.c.b16 %v312, %v311
    %v325 = vpack.c.b16 %v314, %v313
    %v326 = vpack.c.b16 %v316, %v315
    %v327 = vpack.c.b16 %v318, %v317
    %v328 = vpack.c.b16 %v320, %v319
    %337 = vmatprep.subr.bf16.mxu0 0
    %338 = vmatpush1.bf16.msra.mxu0 %v328
    %339 = vmatprep.subr.bf16.mxu0 0
    %340 = vmatpush1.bf16.msra.mxu0 %v327
    %341 = vmatprep.subr.bf16.mxu0 0
    %342 = vmatpush1.bf16.msra.mxu0 %v326
    %343 = vmatprep.subr.bf16.mxu0 0
    %344 = vmatpush1.bf16.msra.mxu0 %v325
    %345 = vmatprep.subr.bf16.mxu0 0
    %346 = vmatpush1.bf16.msra.mxu0 %v324
    %347 = vmatprep.subr.bf16.mxu0 0
    %348 = vmatpush1.bf16.msra.mxu0 %v323
    %349 = vmatprep.subr.bf16.mxu0 0
    %350 = vmatpush1.bf16.msra.mxu0 %v322
    %351 = vmatprep.subr.bf16.mxu0 0
    %352 = vmatpush1.bf16.msra.mxu0 %v321
    %353 = vmatprep.subr.bf16.mxu0 0
    %354 = vmatpush2.bf16.msra.mxu0 0
    %355 = vmatprep.subr.bf16.mxu0 0
    %356 = vmatpush2.bf16.msra.mxu0 0
    %357 = vmatprep.subr.bf16.mxu0 0
    %358 = vmatpush2.bf16.msra.mxu0 0
    %359 = vmatprep.subr.bf16.mxu0 0
    %360 = vmatpush2.bf16.msra.mxu0 0
    %361 = vmatprep.subr.bf16.mxu0 0
    %362 = vmatpush2.bf16.msra.mxu0 0
    %363 = vmatprep.subr.bf16.mxu0 0
    %364 = vmatpush2.bf16.msra.mxu0 0
    %365 = vmatprep.subr.bf16.mxu0 0
    %366 = vmatpush2.bf16.msra.mxu0 0
    %367 = vmatprep.subr.bf16.mxu0 0
    %368 = vmatpush2.bf16.msra.mxu0 0
    %369 = vmatprep.mubr.bf16.mxu0 0
    %370 = vmatmul.mubr.bf16.gmra.mxu0 %v287
    %v371 = vpop.f32.mrf.mxu0
    %v372 = vadd.f32 %v277, %v371
    %v373 = vpop.f32.mrf.mxu0
    %v374 = vpop.f32.mrf.mxu0
    %v375 = vadd.f32 %v280, %v374
    %v376 = vpop.f32.mrf.mxu0
    %377 = vdwg.mxu0
    %v378 = vld [vmem:[%s3] sm:$0x1]
    %v380 = vlaneseq
    %v381 = vshrl.u32 %v380, 7
    %v382 = vsub.s32 0, %v381
    %v383 = vrot.slane %v378, %v382
    %v385 = vadd.f32 %v372, %v383
    %v386 = vadd.f32 %v375, %v383
    %v387 = vmax.f32 %v385, 0.0
    %v388 = vmax.f32 %v386, 0.0
    %v389 = vpack.c.bf16 %v388, %v387
    %v391 = vunpack.c.l.b16 %v389
    %v392 = vunpack.c.h.b16 %v389
    %v393 = vpack.c.b16 %v391, %v391
    %v394 = vpack.c.b16 %v392, %v392
    %397 = vst [vmem:[%s4] sm:$0xf] %v393
    %398 = vst [vmem:[%s4 + $0x4] sm:$0xf] %v394
  $region25: #{graphsage_forward.4} parent=0 // pred_fallthru
    _
  // Predicated region
  $region26: #{graphsage_forward.4} parent=0 // pred_check
    _
  $region27: #{graphsage_forward.4} parent=0 // pred_check_branch
    %400 = sbr.rel (0) target = $region29
  $region28: #{graphsage_forward.4} parent=0 // pred_region
    _
  $region29: #{graphsage_forward.4} parent=0 // pred_fallthru
    _
  // Predicated region
  $region30: #{graphsage_forward.4} parent=0 // pred_check
    _
  $region31: #{graphsage_forward.4} parent=0 // pred_check_branch
    %402 = sbr.rel (0) target = $region33
  $region32: #{graphsage_forward.4} parent=0 // pred_region
    _
  $region33: #{graphsage_forward.4} parent=0 // pred_fallthru
    _

// kernel: graphsage_forward.3
$region0: #{graphsage_forward.3}
  #allocation0 [shape = 'u32[]', space=smem, size = 0x4, offset = 0x4, fixed_abs, tag = 'smem constant byte address 0x4 - core index']
  #allocation1 [shape = 'u32[144,128]{1,0:T(1,128)}', space=vmem, size = 0x12000, scoped, tag = 'internal scratch']
  #allocation2 [shape = 'f32[16,128]{1,0:T(8,128)}', space=vmem, size = 0x2000, scoped, tag = 'scratch operand']
  %s0 = inlined_call_operand.vmem [shape: bf16[32,128], index: 0, kind: input, shape index: {}]
  %s1 = inlined_call_operand.vmem [shape: bf16[128,128], index: 1, kind: input, shape index: {}]
  %s2 = inlined_call_operand.vmem [shape: bf16[2,128,128], index: 2, kind: input, shape index: {}]
  %s3 = inlined_call_operand.vmem [shape: f32[1,128], index: 3, kind: input, shape index: {}]
  %s4 = inlined_call_operand.vmem [shape: bf16[32,128], index: 4, kind: output, shape index: {}]
  %s5 = sld [smem:[#allocation0]]
  $region57: #{graphsage_forward.3} parent=0
    _
  %s7 = ssub.s32 1, %s5
  %s8 = scalar_select 0, %s7, %s5
  loop: start=0, step=1, limit=4
  $region2: #{graphsage_forward.3} parent=0 // loop_pre_header
    _
  $region3: #{graphsage_forward.3} parent=0 // loop_header
    %s10 = sphi 0, %s14
    %p11 = scmp.ge.s32.totalorder %s10, 4
    %s17 = sphi 0, %s29
    %s18 = sphi 0, %s25
    %s19 = sphi 0, %s17
    %s20 = sphi 0, %s18
    %s21 = sphi 0, %s19
    %s22 = sphi 0, %s20
    %s34 = sphi 0, %s36
    %s37 = sphi 0, %s34
    %s38 = sphi 0, %s37
    %s54 = sphi 0, %s38
    %s58 = sphi 0, %s58
    %s60 = sphi 0, %s58
    %s61 = sphi 0, %s60
    %s75 = sphi 0, %s61
    %s79 = sphi 0, %s79
    %s81 = sphi 0, %s79
    %s82 = sphi 0, %s81
    %s96 = sphi 0, %s82
    %s100 = sphi 0, %s100
    %s102 = sphi 0, %s100
    %s103 = sphi 0, %s102
    %s117 = sphi 0, %s103
    %s123 = sphi 0, %s125
    %s126 = sphi 0, %s123
    %s127 = sphi 0, %s126
    %s143 = sphi 0, %s127
  $region4: #{graphsage_forward.3} parent=0 // loop_header_branch
    %13 = sbr.rel (%p11) target = $region8
  $region5: #{graphsage_forward.3} parent=0 // loop_body
    %s15 = ssub.s32 %s10, 1
    %s16 = ssub.s32 %s10, 2
    %s23 = sadd.s32 1, %s18
    %p24 = scmp.ge.s32.totalorder %s23, 1
    %s25 = scalar_select %p24, 0, %s23
    %s26 = sadd.s32 1, %s17
    %s27 = scalar_select %p24, %s26, %s17
    %p28 = scmp.ge.s32.totalorder %s27, 2
    %s29 = scalar_select %p28, 0, %s27
    %s30 = ssub.s32 %s17, %s29
    %s31 = ssub.s32 %s18, %s25
    %s32 = sor.u32 %s30, %s31
    %p33 = scmp.eq.s32.totalorder %s32, 0
    %s35 = sadd.s32 %s34, 1
    %s36 = scalar_select %p33, %s34, %s35
    %p39 = pneg %p33
    %p40 = scmp.eq.s32.totalorder %s10, 1
    %p41 = por %p39, %p40
    %p42 = scmp.ne.s32.totalorder %s34, %s37
    %p43 = scmp.eq.s32.totalorder %s10, 0
    %p44 = por %p42, %p43
    %p45 = scmp.ne.s32.totalorder %s34, %s37
    %p46 = scmp.eq.s32.totalorder %s15, 1
    %p47 = por %p45, %p46
    %p48 = scmp.ne.s32.totalorder %s37, %s38
    %p49 = scmp.eq.s32.totalorder %s15, 0
    %p50 = por %p48, %p49
    %p51 = scmp.ne.s32.totalorder %s37, %s38
    %p52 = scmp.eq.s32.totalorder %s16, 1
    %p53 = por %p51, %p52
    %p55 = scmp.ne.s32.totalorder %s38, %s54
    %p56 = scmp.eq.s32.totalorder %s16, 0
    %p57 = por %p55, %p56
    %s59 = sadd.s32 %s58, 1
    %p62 = scmp.eq.s32.totalorder %s10, 1
    %p63 = scmp.ne.s32.totalorder %s58, %s60
    %p64 = scmp.eq.s32.totalorder %s10, 0
    %p65 = por %p63, %p64
    %p66 = scmp.ne.s32.totalorder %s58, %s60
    %p67 = scmp.eq.s32.totalorder %s15, 1
    %p68 = por %p66, %p67
    %p69 = scmp.ne.s32.totalorder %s60, %s61
    %p70 = scmp.eq.s32.totalorder %s15, 0
    %p71 = por %p69, %p70
    %p72 = scmp.ne.s32.totalorder %s60, %s61
    %p73 = scmp.eq.s32.totalorder %s16, 1
    %p74 = por %p72, %p73
    %p76 = scmp.ne.s32.totalorder %s61, %s75
    %p77 = scmp.eq.s32.totalorder %s16, 0
    %p78 = por %p76, %p77
    %s80 = sadd.s32 %s79, 1
    %p83 = scmp.eq.s32.totalorder %s10, 1
    %p84 = scmp.ne.s32.totalorder %s79, %s81
    %p85 = scmp.eq.s32.totalorder %s10, 0
    %p86 = por %p84, %p85
    %p87 = scmp.ne.s32.totalorder %s79, %s81
    %p88 = scmp.eq.s32.totalorder %s15, 1
    %p89 = por %p87, %p88
    %p90 = scmp.ne.s32.totalorder %s81, %s82
    %p91 = scmp.eq.s32.totalorder %s15, 0
    %p92 = por %p90, %p91
    %p93 = scmp.ne.s32.totalorder %s81, %s82
    %p94 = scmp.eq.s32.totalorder %s16, 1
    %p95 = por %p93, %p94
    %p97 = scmp.ne.s32.totalorder %s82, %s96
    %p98 = scmp.eq.s32.totalorder %s16, 0
    %p99 = por %p97, %p98
    %s101 = sadd.s32 %s100, 1
    %p104 = scmp.eq.s32.totalorder %s10, 1
    %p105 = scmp.ne.s32.totalorder %s100, %s102
    %p106 = scmp.eq.s32.totalorder %s10, 0
    %p107 = por %p105, %p106
    %p108 = scmp.ne.s32.totalorder %s100, %s102
    %p109 = scmp.eq.s32.totalorder %s15, 1
    %p110 = por %p108, %p109
    %p111 = scmp.ne.s32.totalorder %s102, %s103
    %p112 = scmp.eq.s32.totalorder %s15, 0
    %p113 = por %p111, %p112
    %p114 = scmp.ne.s32.totalorder %s102, %s103
    %p115 = scmp.eq.s32.totalorder %s16, 1
    %p116 = por %p114, %p115
    %p118 = scmp.ne.s32.totalorder %s103, %s117
    %p119 = scmp.eq.s32.totalorder %s16, 0
    %p120 = por %p118, %p119
    %s121 = ssub.s32 %s17, %s29
    %p122 = scmp.eq.s32.totalorder %s121, 0
    %s124 = sadd.s32 %s123, 1
    %s125 = scalar_select %p122, %s123, %s124
    %p128 = pneg %p122
    %p129 = scmp.eq.s32.totalorder %s10, 1
    %p130 = por %p128, %p129
    %p131 = scmp.ne.s32.totalorder %s123, %s126
    %p132 = scmp.eq.s32.totalorder %s10, 0
    %p133 = por %p131, %p132
    %p134 = scmp.ne.s32.totalorder %s123, %s126
    %p135 = scmp.eq.s32.totalorder %s15, 1
    %p136 = por %p134, %p135
    %p137 = scmp.ne.s32.totalorder %s126, %s127
    %p138 = scmp.eq.s32.totalorder %s15, 0
    %p139 = por %p137, %p138
    %p140 = scmp.ne.s32.totalorder %s126, %s127
    %p141 = scmp.eq.s32.totalorder %s16, 1
    %p142 = por %p140, %p141
    %p144 = scmp.ne.s32.totalorder %s127, %s143
    %p145 = scmp.eq.s32.totalorder %s16, 0
    %p146 = por %p144, %p145
    %p147 = scmp.le.s32.totalorder 1, %s10
    %p148 = scmp.lt.s32.totalorder %s10, 3
    %p149 = pnand %p147, %p148
    %p150 = pneg %p149
    // Predicated region
    $region9: #{graphsage_forward.3} parent=5 // pred_check
      _
    $region10: #{graphsage_forward.3} parent=5 // pred_check_branch
      %152 = sbr.rel (%p149) target = $region12
    $region11: #{graphsage_forward.3} parent=5 // pred_region
      %s153 = ssub.s32 %s10, 1
      // Predicated region
      $region13: #{graphsage_forward.3} parent=11 // pred_check
        %p154 = pneg %p71
      $region14: #{graphsage_forward.3} parent=11 // pred_check_branch
        %156 = sbr.rel (%p154) target = $region16
      $region15: #{graphsage_forward.3} parent=11 // pred_region
        _
      $region16: #{graphsage_forward.3} parent=11 // pred_fallthru
        _
      // Predicated region
      $region17: #{graphsage_forward.3} parent=11 // pred_check
        %p157 = pneg %p92
      $region18: #{graphsage_forward.3} parent=11 // pred_check_branch
        %159 = sbr.rel (%p157) target = $region20
      $region19: #{graphsage_forward.3} parent=11 // pred_region
        _
      $region20: #{graphsage_forward.3} parent=11 // pred_fallthru
        _
      // Predicated region
      $region21: #{graphsage_forward.3} parent=11 // pred_check
        %p160 = pneg %p113
      $region22: #{graphsage_forward.3} parent=11 // pred_check_branch
        %162 = sbr.rel (%p160) target = $region24
      $region23: #{graphsage_forward.3} parent=11 // pred_region
        _
      $region24: #{graphsage_forward.3} parent=11 // pred_fallthru
        _
    $region12: #{graphsage_forward.3} parent=5 // pred_fallthru
      _
    %p163 = scmp.lt.s32.totalorder %s10, 2
    // Predicated region
    $region25: #{graphsage_forward.3} parent=5 // pred_check
      %p164 = pneg %p163
    $region26: #{graphsage_forward.3} parent=5 // pred_check_branch
      %166 = sbr.rel (%p164) target = $region28
    $region27: #{graphsage_forward.3} parent=5 // pred_region
      // Predicated region
      $region29: #{graphsage_forward.3} parent=27 // pred_check
        %p167 = pneg %p44
      $region30: #{graphsage_forward.3} parent=27 // pred_check_branch
        %169 = sbr.rel (%p167) target = $region32
      $region31: #{graphsage_forward.3} parent=27 // pred_region
        %s170 = smul.u32 2, %s17
        %p171 = scmp.lt.s32.totalorder %s170, 3
        %s172 = scalar_select %p171, %s170, 3
        %p173 = scmp.lt.s32.totalorder %s18, 0
        %s174 = scalar_select %p173, %s18, 0
        %s175 = sadd.s32 %s174, %s172
        %s176 = smul.addr %s175, 4
        %s177 = scalar_lea.vmem %s0, %s176
        %s178 = smul.u32 2, %s17
      $region32: #{graphsage_forward.3} parent=27 // pred_fallthru
        _
    $region28: #{graphsage_forward.3} parent=5 // pred_fallthru
      _
    %p179 = scmp.le.s32.totalorder 1, %s10
    %p180 = scmp.lt.s32.totalorder %s10, 3
    %p181 = pnand %p179, %p180
    %p182 = pneg %p181
    // Predicated region
    $region33: #{graphsage_forward.3} parent=5 // pred_check
      _
    $region34: #{graphsage_forward.3} parent=5 // pred_check_branch
      %184 = sbr.rel (%p181) target = $region36
    $region35: #{graphsage_forward.3} parent=5 // pred_region
      %s185 = ssub.s32 %s10, 1
      %s186 = smul.u32 2, %s19
      %p187 = scmp.lt.s32.totalorder %s186, 3
      %s188 = scalar_select %p187, %s186, 3
      %p189 = scmp.lt.s32.totalorder %s20, 0
      %s190 = scalar_select %p189, %s20, 0
      %s191 = sadd.s32 %s190, %s188
      %s192 = smul.addr %s191, 4
      %s193 = scalar_lea.vmem %s0, %s192
      %p194 = pneg %p50
      %p195 = pneg %p47
      %p196 = pneg %p71
      %p197 = pneg %p68
      %p198 = pneg %p92
      %p199 = pneg %p89
      %p200 = pneg %p113
      %p201 = pneg %p110
      %p202 = pneg %p139
      %p203 = pneg %p136
      %s204 = smul.u32 2, %s19
      %p205 = scmp.lt.s32.totalorder %s204, 3
      %s206 = scalar_select %p205, %s204, 3
      %s207 = smul.addr %s206, 4
      %s208 = scalar_lea.vmem %s4, %s207
      %s209 = smul.u32 2, %s19
      %p210 = scmp.lt.s32.totalorder %s209, 3
      %s211 = scalar_select %p210, %s209, 3
      %p212 = scmp.lt.s32.totalorder %s20, 0
      %s213 = scalar_select %p212, %s20, 0
      %s214 = sadd.s32 %s213, %s211
      %s215 = smul.addr %s214, 4
      %s216 = scalar_lea.vmem %s0, %s215
      %s217 = smul.u32 2, %s19
      %s218 = smul.u32 2, %s19
      %p219 = scmp.lt.s32.totalorder %s218, 3
      %s220 = scalar_select %p219, %s218, 3
      %s221 = smul.addr %s220, 4
      %s222 = scalar_lea.vmem %s4, %s221
      %s223 = smul.u32 2, %s19
      %p225 = scmp.eq.s32.totalorder %s20, 0
      // Predicated region
      $region37: #{graphsage_forward.3} parent=35 // pred_check
        %p226 = pneg %p225
      $region38: #{graphsage_forward.3} parent=35 // pred_check_branch
        %228 = sbr.rel (%p226) target = $region40
      $region39: #{graphsage_forward.3} parent=35 // pred_region
        %229 = vst [vmem:[#allocation2] sm:$0xff] 0.0
        %230 = vst [vmem:[#allocation2 + $0x8] sm:$0xff] 0.0
      $region40: #{graphsage_forward.3} parent=35 // pred_fallthru
        _
      %s231 = smul.u32 %s20, 128
      %v232 = vld [vmem:[#allocation2] sm:$0xff]
      %v233 = vld [vmem:[#allocation2 + $0x8] sm:$0xff]
      %v234 = vld [vmem:[%s216] sm:$0xf]
      %v235 = vld [vmem:[%s216 + $0x4] sm:$0xf]
      %s236 = sshra.s32 %s231, 3
      %s237 = sand.u32 %s231, 7
      %s238 = smul.addr %s236, 4
      %s239 = scalar_lea.vmem %s1, %s238
      %v240 = vld [vmem:[%s239] sm:$0xf]
      %v241 = vld [vmem:[%s239 + $0x4] sm:$0xf]
      %v242 = vld [vmem:[%s239 + $0x8] sm:$0xf]
      %v243 = vld [vmem:[%s239 + $0xc] sm:$0xf]
      %v244 = vld [vmem:[%s239 + $0x10] sm:$0xf]
      %v245 = vld [vmem:[%s239 + $0x14] sm:$0xf]
      %v246 = vld [vmem:[%s239 + $0x18] sm:$0xf]
      %v247 = vld [vmem:[%s239 + $0x1c] sm:$0xf]
      %v248 = vld [vmem:[%s239 + $0x20] sm:$0xf]
      %v249 = vld [vmem:[%s239 + $0x24] sm:$0xf]
      %v250 = vld [vmem:[%s239 + $0x28] sm:$0xf]
      %v251 = vld [vmem:[%s239 + $0x2c] sm:$0xf]
      %v252 = vld [vmem:[%s239 + $0x30] sm:$0xf]
      %v253 = vld [vmem:[%s239 + $0x34] sm:$0xf]
      %v254 = vld [vmem:[%s239 + $0x38] sm:$0xf]
      %v255 = vld [vmem:[%s239 + $0x3c] sm:$0xf]
      %v258 = vunpack.c.l.b16 %v234
      %v259 = vunpack.c.l.b16 %v235
      %v260 = vpack.c.b16 %v259, %v258
      %v278 = vunpack.c.l.b16 %v240
      %v279 = vunpack.c.l.b16 %v241
      %v280 = vunpack.c.l.b16 %v242
      %v281 = vunpack.c.l.b16 %v243
      %v282 = vunpack.c.l.b16 %v244
      %v283 = vunpack.c.l.b16 %v245
      %v284 = vunpack.c.l.b16 %v246
      %v285 = vunpack.c.l.b16 %v247
      %v286 = vunpack.c.l.b16 %v248
      %v287 = vunpack.c.l.b16 %v249
      %v288 = vunpack.c.l.b16 %v250
      %v289 = vunpack.c.l.b16 %v251
      %v290 = vunpack.c.l.b16 %v252
      %v291 = vunpack.c.l.b16 %v253
      %v292 = vunpack.c.l.b16 %v254
      %v293 = vunpack.c.l.b16 %v255
      %v294 = vpack.c.b16 %v279, %v278
      %v295 = vpack.c.b16 %v281, %v280
      %v296 = vpack.c.b16 %v283, %v282
      %v297 = vpack.c.b16 %v285, %v284
      %v298 = vpack.c.b16 %v287, %v286
      %v299 = vpack.c.b16 %v289, %v288
      %v300 = vpack.c.b16 %v291, %v290
      %v301 = vpack.c.b16 %v293, %v292
      %310 = vmatprep.subr.bf16.mxu0 0
      %311 = vmatpush1.bf16.msra.mxu0 %v301
      %312 = vmatprep.subr.bf16.mxu0 0
      %313 = vmatpush1.bf16.msra.mxu0 %v300
      %314 = vmatprep.subr.bf16.mxu0 0
      %315 = vmatpush1.bf16.msra.mxu0 %v299
      %316 = vmatprep.subr.bf16.mxu0 0
      %317 = vmatpush1.bf16.msra.mxu0 %v298
      %318 = vmatprep.subr.bf16.mxu0 0
      %319 = vmatpush1.bf16.msra.mxu0 %v297
      %320 = vmatprep.subr.bf16.mxu0 0
      %321 = vmatpush1.bf16.msra.mxu0 %v296
      %322 = vmatprep.subr.bf16.mxu0 0
      %323 = vmatpush1.bf16.msra.mxu0 %v295
      %324 = vmatprep.subr.bf16.mxu0 0
      %325 = vmatpush1.bf16.msra.mxu0 %v294
      %326 = vmatprep.subr.bf16.mxu0 0
      %327 = vmatpush2.bf16.msra.mxu0 0
      %328 = vmatprep.subr.bf16.mxu0 0
      %329 = vmatpush2.bf16.msra.mxu0 0
      %330 = vmatprep.subr.bf16.mxu0 0
      %331 = vmatpush2.bf16.msra.mxu0 0
      %332 = vmatprep.subr.bf16.mxu0 0
      %333 = vmatpush2.bf16.msra.mxu0 0
      %334 = vmatprep.subr.bf16.mxu0 0
      %335 = vmatpush2.bf16.msra.mxu0 0
      %336 = vmatprep.subr.bf16.mxu0 0
      %337 = vmatpush2.bf16.msra.mxu0 0
      %338 = vmatprep.subr.bf16.mxu0 0
      %339 = vmatpush2.bf16.msra.mxu0 0
      %340 = vmatprep.subr.bf16.mxu0 0
      %341 = vmatpush2.bf16.msra.mxu0 0
      %342 = vmatprep.mubr.bf16.mxu0 0
      %343 = vmatmul.mubr.bf16.gmra.mxu0 %v260
      %v344 = vpop.f32.mrf.mxu0
      %v345 = vadd.f32 0.0, %v344
      %v346 = vpop.f32.mrf.mxu0
      %v347 = vpop.f32.mrf.mxu0
      %v348 = vadd.f32 0.0, %v347
      %v349 = vpop.f32.mrf.mxu0
      %350 = vdwg.mxu0
      %v351 = vadd.f32 %v232, %v345
      %v352 = vadd.f32 %v233, %v348
      %353 = vst [vmem:[#allocation2] sm:$0xff] %v351
      %354 = vst [vmem:[#allocation2 + $0x8] sm:$0xff] %v352
      // Predicated region
      $region41: #{graphsage_forward.3} parent=35 // pred_check
        %p355 = pneg %p225
      $region42: #{graphsage_forward.3} parent=35 // pred_check_branch
        %357 = sbr.rel (%p355) target = $region44
      $region43: #{graphsage_forward.3} parent=35 // pred_region
        %s358 = smul.u32 %s19, 16
        %s359 = sshra.s32 %s358, 3
        %s360 = sand.u32 %s358, 7
        %s361 = smul.addr %s359, 4
        %s362 = scalar_lea.vmem %s1, %s361
        %v363 = vld [vmem:[%s362] sm:$0xf]
        %v364 = vld [vmem:[%s362 + $0x4] sm:$0xf]
        %v365 = vld [vmem:[%s2] sm:$0xf]
        %v366 = vld [vmem:[%s2 + $0x4] sm:$0xf]
        %v367 = vld [vmem:[%s2 + $0x8] sm:$0xf]
        %v368 = vld [vmem:[%s2 + $0xc] sm:$0xf]
        %v369 = vld [vmem:[%s2 + $0x10] sm:$0xf]
        %v370 = vld [vmem:[%s2 + $0x14] sm:$0xf]
        %v371 = vld [vmem:[%s2 + $0x18] sm:$0xf]
        %v372 = vld [vmem:[%s2 + $0x1c] sm:$0xf]
        %v373 = vld [vmem:[%s2 + $0x20] sm:$0xf]
        %v374 = vld [vmem:[%s2 + $0x24] sm:$0xf]
        %v375 = vld [vmem:[%s2 + $0x28] sm:$0xf]
        %v376 = vld [vmem:[%s2 + $0x2c] sm:$0xf]
        %v377 = vld [vmem:[%s2 + $0x30] sm:$0xf]
        %v378 = vld [vmem:[%s2 + $0x34] sm:$0xf]
        %v379 = vld [vmem:[%s2 + $0x38] sm:$0xf]
        %v380 = vld [vmem:[%s2 + $0x3c] sm:$0xf]
        %v381 = vld [vmem:[#allocation2] sm:$0xff]
        %v382 = vld [vmem:[#allocation2 + $0x8] sm:$0xff]
        %v383 = vpack.c.bf16 %v382, %v381
        %s384 = scalar_lea.vmem %s2, 64
        %v385 = vld [vmem:[%s384] sm:$0xf]
        %v386 = vld [vmem:[%s384 + $0x4] sm:$0xf]
        %v387 = vld [vmem:[%s384 + $0x8] sm:$0xf]
        %v388 = vld [vmem:[%s384 + $0xc] sm:$0xf]
        %v389 = vld [vmem:[%s384 + $0x10] sm:$0xf]
        %v390 = vld [vmem:[%s384 + $0x14] sm:$0xf]
        %v391 = vld [vmem:[%s384 + $0x18] sm:$0xf]
        %v392 = vld [vmem:[%s384 + $0x1c] sm:$0xf]
        %v393 = vld [vmem:[%s384 + $0x20] sm:$0xf]
        %v394 = vld [vmem:[%s384 + $0x24] sm:$0xf]
        %v395 = vld [vmem:[%s384 + $0x28] sm:$0xf]
        %v396 = vld [vmem:[%s384 + $0x2c] sm:$0xf]
        %v397 = vld [vmem:[%s384 + $0x30] sm:$0xf]
        %v398 = vld [vmem:[%s384 + $0x34] sm:$0xf]
        %v399 = vld [vmem:[%s384 + $0x38] sm:$0xf]
        %v400 = vld [vmem:[%s384 + $0x3c] sm:$0xf]
        %v417 = vunpack.c.l.b16 %v385
        %v418 = vunpack.c.l.b16 %v386
        %v419 = vunpack.c.l.b16 %v387
        %v420 = vunpack.c.l.b16 %v388
        %v421 = vunpack.c.l.b16 %v389
        %v422 = vunpack.c.l.b16 %v390
        %v423 = vunpack.c.l.b16 %v391
        %v424 = vunpack.c.l.b16 %v392
        %v425 = vunpack.c.l.b16 %v393
        %v426 = vunpack.c.l.b16 %v394
        %v427 = vunpack.c.l.b16 %v395
        %v428 = vunpack.c.l.b16 %v396
        %v429 = vunpack.c.l.b16 %v397
        %v430 = vunpack.c.l.b16 %v398
        %v431 = vunpack.c.l.b16 %v399
        %v432 = vunpack.c.l.b16 %v400
        %v433 = vpack.c.b16 %v418, %v417
        %v434 = vpack.c.b16 %v420, %v419
        %v435 = vpack.c.b16 %v422, %v421
        %v436 = vpack.c.b16 %v424, %v423
        %v437 = vpack.c.b16 %v426, %v425
        %v438 = vpack.c.b16 %v428, %v427
        %v439 = vpack.c.b16 %v430, %v429
        %v440 = vpack.c.b16 %v432, %v431
        %449 = vmatprep.subr.bf16.mxu0 0
        %450 = vmatpush1.bf16.msra.mxu0 %v440
        %451 = vmatprep.subr.bf16.mxu0 0
        %452 = vmatpush1.bf16.msra.mxu0 %v439
        %453 = vmatprep.subr.bf16.mxu0 0
        %454 = vmatpush1.bf16.msra.mxu0 %v438
        %455 = vmatprep.subr.bf16.mxu0 0
        %456 = vmatpush1.bf16.msra.mxu0 %v437
        %457 = vmatprep.subr.bf16.mxu0 0
        %458 = vmatpush1.bf16.msra.mxu0 %v436
        %459 = vmatprep.subr.bf16.mxu0 0
        %460 = vmatpush1.bf16.msra.mxu0 %v435
        %461 = vmatprep.subr.bf16.mxu0 0
        %462 = vmatpush1.bf16.msra.mxu0 %v434
        %463 = vmatprep.subr.bf16.mxu0 0
        %464 = vmatpush1.bf16.msra.mxu0 %v433
        %465 = vmatprep.subr.bf16.mxu0 0
        %466 = vmatpush2.bf16.msra.mxu0 0
        %467 = vmatprep.subr.bf16.mxu0 0
        %468 = vmatpush2.bf16.msra.mxu0 0
        %469 = vmatprep.subr.bf16.mxu0 0
        %470 = vmatpush2.bf16.msra.mxu0 0
        %471 = vmatprep.subr.bf16.mxu0 0
        %472 = vmatpush2.bf16.msra.mxu0 0
        %473 = vmatprep.subr.bf16.mxu0 0
        %474 = vmatpush2.bf16.msra.mxu0 0
        %475 = vmatprep.subr.bf16.mxu0 0
        %476 = vmatpush2.bf16.msra.mxu0 0
        %477 = vmatprep.subr.bf16.mxu0 0
        %478 = vmatpush2.bf16.msra.mxu0 0
        %479 = vmatprep.subr.bf16.mxu0 0
        %480 = vmatpush2.bf16.msra.mxu0 0
        %481 = vmatprep.mubr.bf16.mxu0 0
        %482 = vmatmul.mubr.bf16.gmra.mxu0 %v383
        %v483 = vpop.f32.mrf.mxu0
        %v484 = vadd.f32 0.0, %v483
        %v485 = vpop.f32.mrf.mxu0
        %v486 = vpop.f32.mrf.mxu0
        %v487 = vadd.f32 0.0, %v486
        %v488 = vpop.f32.mrf.mxu0
        %489 = vdwg.mxu0
        %v492 = vunpack.c.l.b16 %v363
        %v493 = vunpack.c.l.b16 %v364
        %v494 = vpack.c.b16 %v493, %v492
        %v512 = vunpack.c.l.b16 %v365
        %v513 = vunpack.c.l.b16 %v366
        %v514 = vunpack.c.l.b16 %v367
        %v515 = vunpack.c.l.b16 %v368
        %v516 = vunpack.c.l.b16 %v369
        %v517 = vunpack.c.l.b16 %v370
        %v518 = vunpack.c.l.b16 %v371
        %v519 = vunpack.c.l.b16 %v372
        %v520 = vunpack.c.l.b16 %v373
        %v521 = vunpack.c.l.b16 %v374
        %v522 = vunpack.c.l.b16 %v375
        %v523 = vunpack.c.l.b16 %v376
        %v524 = vunpack.c.l.b16 %v377
        %v525 = vunpack.c.l.b16 %v378
        %v526 = vunpack.c.l.b16 %v379
        %v527 = vunpack.c.l.b16 %v380
        %v528 = vpack.c.b16 %v513, %v512
        %v529 = vpack.c.b16 %v515, %v514
        %v530 = vpack.c.b16 %v517, %v516
        %v531 = vpack.c.b16 %v519, %v518
        %v532 = vpack.c.b16 %v521, %v520
        %v533 = vpack.c.b16 %v523, %v522
        %v534 = vpack.c.b16 %v525, %v524
        %v535 = vpack.c.b16 %v527, %v526
        %544 = vmatprep.subr.bf16.mxu0 0
        %545 = vmatpush1.bf16.msra.mxu0 %v535
        %546 = vmatprep.subr.bf16.mxu0 0
        %547 = vmatpush1.bf16.msra.mxu0 %v534
        %548 = vmatprep.subr.bf16.mxu0 0
        %549 = vmatpush1.bf16.msra.mxu0 %v533
        %550 = vmatprep.subr.bf16.mxu0 0
        %551 = vmatpush1.bf16.msra.mxu0 %v532
        %552 = vmatprep.subr.bf16.mxu0 0
        %553 = vmatpush1.bf16.msra.mxu0 %v531
        %554 = vmatprep.subr.bf16.mxu0 0
        %555 = vmatpush1.bf16.msra.mxu0 %v530
        %556 = vmatprep.subr.bf16.mxu0 0
        %557 = vmatpush1.bf16.msra.mxu0 %v529
        %558 = vmatprep.subr.bf16.mxu0 0
        %559 = vmatpush1.bf16.msra.mxu0 %v528
        %560 = vmatprep.subr.bf16.mxu0 0
        %561 = vmatpush2.bf16.msra.mxu0 0
        %562 = vmatprep.subr.bf16.mxu0 0
        %563 = vmatpush2.bf16.msra.mxu0 0
        %564 = vmatprep.subr.bf16.mxu0 0
        %565 = vmatpush2.bf16.msra.mxu0 0
        %566 = vmatprep.subr.bf16.mxu0 0
        %567 = vmatpush2.bf16.msra.mxu0 0
        %568 = vmatprep.subr.bf16.mxu0 0
        %569 = vmatpush2.bf16.msra.mxu0 0
        %570 = vmatprep.subr.bf16.mxu0 0
        %571 = vmatpush2.bf16.msra.mxu0 0
        %572 = vmatprep.subr.bf16.mxu0 0
        %573 = vmatpush2.bf16.msra.mxu0 0
        %574 = vmatprep.subr.bf16.mxu0 0
        %575 = vmatpush2.bf16.msra.mxu0 0
        %576 = vmatprep.mubr.bf16.mxu0 0
        %577 = vmatmul.mubr.bf16.gmra.mxu0 %v494
        %v578 = vpop.f32.mrf.mxu0
        %v579 = vadd.f32 %v484, %v578
        %v580 = vpop.f32.mrf.mxu0
        %v581 = vpop.f32.mrf.mxu0
        %v582 = vadd.f32 %v487, %v581
        %v583 = vpop.f32.mrf.mxu0
        %584 = vdwg.mxu0
        %v585 = vld [vmem:[%s3] sm:$0x1]
        %v587 = vlaneseq
        %v588 = vshrl.u32 %v587, 7
        %v589 = vsub.s32 0, %v588
        %v590 = vrot.slane %v585, %v589
        %v592 = vadd.f32 %v579, %v590
        %v593 = vadd.f32 %v582, %v590
        %v594 = vmax.f32 %v592, 0.0
        %v595 = vmax.f32 %v593, 0.0
        %v596 = vpack.c.bf16 %v595, %v594
        %v598 = vunpack.c.l.b16 %v596
        %v599 = vunpack.c.h.b16 %v596
        %v600 = vpack.c.b16 %v598, %v598
        %v601 = vpack.c.b16 %v599, %v599
        %604 = vst [vmem:[%s222] sm:$0xf] %v600
        %605 = vst [vmem:[%s222 + $0x4] sm:$0xf] %v601
      $region44: #{graphsage_forward.3} parent=35 // pred_fallthru
        _
      %s606 = smul.u32 2, %s19
      %p607 = scmp.lt.s32.totalorder %s606, 3
      %s608 = scalar_select %p607, %s606, 3
      %s609 = smul.addr %s608, 4
      %s610 = scalar_lea.vmem %s4, %s609
      // Predicated region
      $region45: #{graphsage_forward.3} parent=35 // pred_check
        %p611 = pneg %p136
      $region46: #{graphsage_forward.3} parent=35 // pred_check_branch
        %613 = sbr.rel (%p611) target = $region48
      $region47: #{graphsage_forward.3} parent=35 // pred_region
        %s614 = smul.u32 2, %s19
      $region48: #{graphsage_forward.3} parent=35 // pred_fallthru
        _
    $region36: #{graphsage_forward.3} parent=5 // pred_fallthru
      _
    %p615 = scmp.le.s32.totalorder 2, %s10
    // Predicated region
    $region49: #{graphsage_forward.3} parent=5 // pred_check
      %p616 = pneg %p615
    $region50: #{graphsage_forward.3} parent=5 // pred_check_branch
      %618 = sbr.rel (%p616) target = $region52
    $region51: #{graphsage_forward.3} parent=5 // pred_region
      %s619 = ssub.s32 %s10, 2
      // Predicated region
      $region53: #{graphsage_forward.3} parent=51 // pred_check
        %p620 = pneg %p142
      $region54: #{graphsage_forward.3} parent=51 // pred_check_branch
        %622 = sbr.rel (%p620) target = $region56
      $region55: #{graphsage_forward.3} parent=51 // pred_region
        %s623 = smul.u32 2, %s21
        %p624 = scmp.lt.s32.totalorder %s623, 3
        %s625 = scalar_select %p624, %s623, 3
        %s626 = smul.addr %s625, 4
        %s627 = scalar_lea.vmem %s4, %s626
      $region56: #{graphsage_forward.3} parent=51 // pred_fallthru
        _
    $region52: #{graphsage_forward.3} parent=5 // pred_fallthru
      _
  $region6: #{graphsage_forward.3} parent=0 // loop_footer
    %s14 = sadd.s32 1, %s10
  $region7: #{graphsage_forward.3} parent=0 // loop_footer_branch
    %9 = sbr.rel target = $region3
  $region8: #{graphsage_forward.3} parent=0 // loop_exit
    _

// kernel: graphsage_forward.5
$region0: #{graphsage_forward.5}
  #allocation0 [shape = 'u32[]', space=smem, size = 0x4, offset = 0x4, fixed_abs, tag = 'smem constant byte address 0x4 - core index']
  #allocation1 [shape = 'u32[144,128]{1,0:T(1,128)}', space=vmem, size = 0x12000, scoped, tag = 'internal scratch']
  #allocation2 [shape = 'f32[16,128]{1,0:T(8,128)}', space=vmem, size = 0x2000, scoped, tag = 'scratch operand']
  %s0 = inlined_call_operand.vmem [shape: bf16[16,128], index: 0, kind: input, shape index: {}]
  %s1 = inlined_call_operand.vmem [shape: bf16[128,128], index: 1, kind: input, shape index: {}]
  %s2 = inlined_call_operand.vmem [shape: bf16[2,128,128], index: 2, kind: input, shape index: {}]
  %s3 = inlined_call_operand.vmem [shape: f32[1,128], index: 3, kind: input, shape index: {}]
  %s4 = inlined_call_operand.vmem [shape: f32[16,128], index: 4, kind: output, shape index: {}]
  %s5 = sld [smem:[#allocation0]]
  $region34: #{graphsage_forward.5} parent=0
    _
  %s7 = ssub.s32 1, %s5
  %s8 = scalar_select 0, %s7, %s5
  // Predicated region
  $region2: #{graphsage_forward.5} parent=0 // pred_check
    _
  $region3: #{graphsage_forward.5} parent=0 // pred_check_branch
    %10 = sbr.rel (0) target = $region5
  $region4: #{graphsage_forward.5} parent=0 // pred_region
    _
  $region5: #{graphsage_forward.5} parent=0 // pred_fallthru
    _
  // Predicated region
  $region6: #{graphsage_forward.5} parent=0 // pred_check
    _
  $region7: #{graphsage_forward.5} parent=0 // pred_check_branch
    %12 = sbr.rel (0) target = $region9
  $region8: #{graphsage_forward.5} parent=0 // pred_region
    _
  $region9: #{graphsage_forward.5} parent=0 // pred_fallthru
    _
  // Predicated region
  $region10: #{graphsage_forward.5} parent=0 // pred_check
    _
  $region11: #{graphsage_forward.5} parent=0 // pred_check_branch
    %14 = sbr.rel (0) target = $region13
  $region12: #{graphsage_forward.5} parent=0 // pred_region
    _
  $region13: #{graphsage_forward.5} parent=0 // pred_fallthru
    _
  // Predicated region
  $region14: #{graphsage_forward.5} parent=0 // pred_check
    _
  $region15: #{graphsage_forward.5} parent=0 // pred_check_branch
    %16 = sbr.rel (0) target = $region17
  $region16: #{graphsage_forward.5} parent=0 // pred_region
    _
  $region17: #{graphsage_forward.5} parent=0 // pred_fallthru
    _
  %p18 = scmp.eq.s32.totalorder 0, 0
  // Predicated region
  $region18: #{graphsage_forward.5} parent=0 // pred_check
    %p19 = pneg %p18
  $region19: #{graphsage_forward.5} parent=0 // pred_check_branch
    %21 = sbr.rel (%p19) target = $region21
  $region20: #{graphsage_forward.5} parent=0 // pred_region
    %22 = vst [vmem:[#allocation2] sm:$0xff] 0.0
    %23 = vst [vmem:[#allocation2 + $0x8] sm:$0xff] 0.0
  $region21: #{graphsage_forward.5} parent=0 // pred_fallthru
    _
  %s24 = smul.u32 0, 128
  %v25 = vld [vmem:[#allocation2] sm:$0xff]
  %v26 = vld [vmem:[#allocation2 + $0x8] sm:$0xff]
  %v27 = vld [vmem:[%s0] sm:$0xf]
  %v28 = vld [vmem:[%s0 + $0x4] sm:$0xf]
  %s29 = sshra.s32 %s24, 3
  %s30 = sand.u32 %s24, 7
  %s31 = smul.addr %s29, 4
  %s32 = scalar_lea.vmem %s1, %s31
  %v33 = vld [vmem:[%s32] sm:$0xf]
  %v34 = vld [vmem:[%s32 + $0x4] sm:$0xf]
  %v35 = vld [vmem:[%s32 + $0x8] sm:$0xf]
  %v36 = vld [vmem:[%s32 + $0xc] sm:$0xf]
  %v37 = vld [vmem:[%s32 + $0x10] sm:$0xf]
  %v38 = vld [vmem:[%s32 + $0x14] sm:$0xf]
  %v39 = vld [vmem:[%s32 + $0x18] sm:$0xf]
  %v40 = vld [vmem:[%s32 + $0x1c] sm:$0xf]
  %v41 = vld [vmem:[%s32 + $0x20] sm:$0xf]
  %v42 = vld [vmem:[%s32 + $0x24] sm:$0xf]
  %v43 = vld [vmem:[%s32 + $0x28] sm:$0xf]
  %v44 = vld [vmem:[%s32 + $0x2c] sm:$0xf]
  %v45 = vld [vmem:[%s32 + $0x30] sm:$0xf]
  %v46 = vld [vmem:[%s32 + $0x34] sm:$0xf]
  %v47 = vld [vmem:[%s32 + $0x38] sm:$0xf]
  %v48 = vld [vmem:[%s32 + $0x3c] sm:$0xf]
  %v51 = vunpack.c.l.b16 %v27
  %v52 = vunpack.c.l.b16 %v28
  %v53 = vpack.c.b16 %v52, %v51
  %v71 = vunpack.c.l.b16 %v33
  %v72 = vunpack.c.l.b16 %v34
  %v73 = vunpack.c.l.b16 %v35
  %v74 = vunpack.c.l.b16 %v36
  %v75 = vunpack.c.l.b16 %v37
  %v76 = vunpack.c.l.b16 %v38
  %v77 = vunpack.c.l.b16 %v39
  %v78 = vunpack.c.l.b16 %v40
  %v79 = vunpack.c.l.b16 %v41
  %v80 = vunpack.c.l.b16 %v42
  %v81 = vunpack.c.l.b16 %v43
  %v82 = vunpack.c.l.b16 %v44
  %v83 = vunpack.c.l.b16 %v45
  %v84 = vunpack.c.l.b16 %v46
  %v85 = vunpack.c.l.b16 %v47
  %v86 = vunpack.c.l.b16 %v48
  %v87 = vpack.c.b16 %v72, %v71
  %v88 = vpack.c.b16 %v74, %v73
  %v89 = vpack.c.b16 %v76, %v75
  %v90 = vpack.c.b16 %v78, %v77
  %v91 = vpack.c.b16 %v80, %v79
  %v92 = vpack.c.b16 %v82, %v81
  %v93 = vpack.c.b16 %v84, %v83
  %v94 = vpack.c.b16 %v86, %v85
  %103 = vmatprep.subr.bf16.mxu0 0
  %104 = vmatpush1.bf16.msra.mxu0 %v94
  %105 = vmatprep.subr.bf16.mxu0 0
  %106 = vmatpush1.bf16.msra.mxu0 %v93
  %107 = vmatprep.subr.bf16.mxu0 0
  %108 = vmatpush1.bf16.msra.mxu0 %v92
  %109 = vmatprep.subr.bf16.mxu0 0
  %110 = vmatpush1.bf16.msra.mxu0 %v91
  %111 = vmatprep.subr.bf16.mxu0 0
  %112 = vmatpush1.bf16.msra.mxu0 %v90
  %113 = vmatprep.subr.bf16.mxu0 0
  %114 = vmatpush1.bf16.msra.mxu0 %v89
  %115 = vmatprep.subr.bf16.mxu0 0
  %116 = vmatpush1.bf16.msra.mxu0 %v88
  %117 = vmatprep.subr.bf16.mxu0 0
  %118 = vmatpush1.bf16.msra.mxu0 %v87
  %119 = vmatprep.subr.bf16.mxu0 0
  %120 = vmatpush2.bf16.msra.mxu0 0
  %121 = vmatprep.subr.bf16.mxu0 0
  %122 = vmatpush2.bf16.msra.mxu0 0
  %123 = vmatprep.subr.bf16.mxu0 0
  %124 = vmatpush2.bf16.msra.mxu0 0
  %125 = vmatprep.subr.bf16.mxu0 0
  %126 = vmatpush2.bf16.msra.mxu0 0
  %127 = vmatprep.subr.bf16.mxu0 0
  %128 = vmatpush2.bf16.msra.mxu0 0
  %129 = vmatprep.subr.bf16.mxu0 0
  %130 = vmatpush2.bf16.msra.mxu0 0
  %131 = vmatprep.subr.bf16.mxu0 0
  %132 = vmatpush2.bf16.msra.mxu0 0
  %133 = vmatprep.subr.bf16.mxu0 0
  %134 = vmatpush2.bf16.msra.mxu0 0
  %135 = vmatprep.mubr.bf16.mxu0 0
  %136 = vmatmul.mubr.bf16.gmra.mxu0 %v53
  %v137 = vpop.f32.mrf.mxu0
  %v138 = vadd.f32 0.0, %v137
  %v139 = vpop.f32.mrf.mxu0
  %v140 = vpop.f32.mrf.mxu0
  %v141 = vadd.f32 0.0, %v140
  %v142 = vpop.f32.mrf.mxu0
  %143 = vdwg.mxu0
  %v144 = vadd.f32 %v25, %v138
  %v145 = vadd.f32 %v26, %v141
  %146 = vst [vmem:[#allocation2] sm:$0xff] %v144
  %147 = vst [vmem:[#allocation2 + $0x8] sm:$0xff] %v145
  // Predicated region
  $region22: #{graphsage_forward.5} parent=0 // pred_check
    %p148 = pneg %p18
  $region23: #{graphsage_forward.5} parent=0 // pred_check_branch
    %150 = sbr.rel (%p148) target = $region25
  $region24: #{graphsage_forward.5} parent=0 // pred_region
    %s151 = smul.u32 0, 16
    %s152 = sshra.s32 %s151, 3
    %s153 = sand.u32 %s151, 7
    %s154 = smul.addr %s152, 4
    %s155 = scalar_lea.vmem %s1, %s154
    %v156 = vld [vmem:[%s155] sm:$0xf]
    %v157 = vld [vmem:[%s155 + $0x4] sm:$0xf]
    %v158 = vld [vmem:[%s2] sm:$0xf]
    %v159 = vld [vmem:[%s2 + $0x4] sm:$0xf]
    %v160 = vld [vmem:[%s2 + $0x8] sm:$0xf]
    %v161 = vld [vmem:[%s2 + $0xc] sm:$0xf]
    %v162 = vld [vmem:[%s2 + $0x10] sm:$0xf]
    %v163 = vld [vmem:[%s2 + $0x14] sm:$0xf]
    %v164 = vld [vmem:[%s2 + $0x18] sm:$0xf]
    %v165 = vld [vmem:[%s2 + $0x1c] sm:$0xf]
    %v166 = vld [vmem:[%s2 + $0x20] sm:$0xf]
    %v167 = vld [vmem:[%s2 + $0x24] sm:$0xf]
    %v168 = vld [vmem:[%s2 + $0x28] sm:$0xf]
    %v169 = vld [vmem:[%s2 + $0x2c] sm:$0xf]
    %v170 = vld [vmem:[%s2 + $0x30] sm:$0xf]
    %v171 = vld [vmem:[%s2 + $0x34] sm:$0xf]
    %v172 = vld [vmem:[%s2 + $0x38] sm:$0xf]
    %v173 = vld [vmem:[%s2 + $0x3c] sm:$0xf]
    %v174 = vld [vmem:[#allocation2] sm:$0xff]
    %v175 = vld [vmem:[#allocation2 + $0x8] sm:$0xff]
    %v176 = vpack.c.bf16 %v175, %v174
    %s177 = scalar_lea.vmem %s2, 64
    %v178 = vld [vmem:[%s177] sm:$0xf]
    %v179 = vld [vmem:[%s177 + $0x4] sm:$0xf]
    %v180 = vld [vmem:[%s177 + $0x8] sm:$0xf]
    %v181 = vld [vmem:[%s177 + $0xc] sm:$0xf]
    %v182 = vld [vmem:[%s177 + $0x10] sm:$0xf]
    %v183 = vld [vmem:[%s177 + $0x14] sm:$0xf]
    %v184 = vld [vmem:[%s177 + $0x18] sm:$0xf]
    %v185 = vld [vmem:[%s177 + $0x1c] sm:$0xf]
    %v186 = vld [vmem:[%s177 + $0x20] sm:$0xf]
    %v187 = vld [vmem:[%s177 + $0x24] sm:$0xf]
    %v188 = vld [vmem:[%s177 + $0x28] sm:$0xf]
    %v189 = vld [vmem:[%s177 + $0x2c] sm:$0xf]
    %v190 = vld [vmem:[%s177 + $0x30] sm:$0xf]
    %v191 = vld [vmem:[%s177 + $0x34] sm:$0xf]
    %v192 = vld [vmem:[%s177 + $0x38] sm:$0xf]
    %v193 = vld [vmem:[%s177 + $0x3c] sm:$0xf]
    %v210 = vunpack.c.l.b16 %v178
    %v211 = vunpack.c.l.b16 %v179
    %v212 = vunpack.c.l.b16 %v180
    %v213 = vunpack.c.l.b16 %v181
    %v214 = vunpack.c.l.b16 %v182
    %v215 = vunpack.c.l.b16 %v183
    %v216 = vunpack.c.l.b16 %v184
    %v217 = vunpack.c.l.b16 %v185
    %v218 = vunpack.c.l.b16 %v186
    %v219 = vunpack.c.l.b16 %v187
    %v220 = vunpack.c.l.b16 %v188
    %v221 = vunpack.c.l.b16 %v189
    %v222 = vunpack.c.l.b16 %v190
    %v223 = vunpack.c.l.b16 %v191
    %v224 = vunpack.c.l.b16 %v192
    %v225 = vunpack.c.l.b16 %v193
    %v226 = vpack.c.b16 %v211, %v210
    %v227 = vpack.c.b16 %v213, %v212
    %v228 = vpack.c.b16 %v215, %v214
    %v229 = vpack.c.b16 %v217, %v216
    %v230 = vpack.c.b16 %v219, %v218
    %v231 = vpack.c.b16 %v221, %v220
    %v232 = vpack.c.b16 %v223, %v222
    %v233 = vpack.c.b16 %v225, %v224
    %242 = vmatprep.subr.bf16.mxu0 0
    %243 = vmatpush1.bf16.msra.mxu0 %v233
    %244 = vmatprep.subr.bf16.mxu0 0
    %245 = vmatpush1.bf16.msra.mxu0 %v232
    %246 = vmatprep.subr.bf16.mxu0 0
    %247 = vmatpush1.bf16.msra.mxu0 %v231
    %248 = vmatprep.subr.bf16.mxu0 0
    %249 = vmatpush1.bf16.msra.mxu0 %v230
    %250 = vmatprep.subr.bf16.mxu0 0
    %251 = vmatpush1.bf16.msra.mxu0 %v229
    %252 = vmatprep.subr.bf16.mxu0 0
    %253 = vmatpush1.bf16.msra.mxu0 %v228
    %254 = vmatprep.subr.bf16.mxu0 0
    %255 = vmatpush1.bf16.msra.mxu0 %v227
    %256 = vmatprep.subr.bf16.mxu0 0
    %257 = vmatpush1.bf16.msra.mxu0 %v226
    %258 = vmatprep.subr.bf16.mxu0 0
    %259 = vmatpush2.bf16.msra.mxu0 0
    %260 = vmatprep.subr.bf16.mxu0 0
    %261 = vmatpush2.bf16.msra.mxu0 0
    %262 = vmatprep.subr.bf16.mxu0 0
    %263 = vmatpush2.bf16.msra.mxu0 0
    %264 = vmatprep.subr.bf16.mxu0 0
    %265 = vmatpush2.bf16.msra.mxu0 0
    %266 = vmatprep.subr.bf16.mxu0 0
    %267 = vmatpush2.bf16.msra.mxu0 0
    %268 = vmatprep.subr.bf16.mxu0 0
    %269 = vmatpush2.bf16.msra.mxu0 0
    %270 = vmatprep.subr.bf16.mxu0 0
    %271 = vmatpush2.bf16.msra.mxu0 0
    %272 = vmatprep.subr.bf16.mxu0 0
    %273 = vmatpush2.bf16.msra.mxu0 0
    %274 = vmatprep.mubr.bf16.mxu0 0
    %275 = vmatmul.mubr.bf16.gmra.mxu0 %v176
    %v276 = vpop.f32.mrf.mxu0
    %v277 = vadd.f32 0.0, %v276
    %v278 = vpop.f32.mrf.mxu0
    %v279 = vpop.f32.mrf.mxu0
    %v280 = vadd.f32 0.0, %v279
    %v281 = vpop.f32.mrf.mxu0
    %282 = vdwg.mxu0
    %v285 = vunpack.c.l.b16 %v156
    %v286 = vunpack.c.l.b16 %v157
    %v287 = vpack.c.b16 %v286, %v285
    %v305 = vunpack.c.l.b16 %v158
    %v306 = vunpack.c.l.b16 %v159
    %v307 = vunpack.c.l.b16 %v160
    %v308 = vunpack.c.l.b16 %v161
    %v309 = vunpack.c.l.b16 %v162
    %v310 = vunpack.c.l.b16 %v163
    %v311 = vunpack.c.l.b16 %v164
    %v312 = vunpack.c.l.b16 %v165
    %v313 = vunpack.c.l.b16 %v166
    %v314 = vunpack.c.l.b16 %v167
    %v315 = vunpack.c.l.b16 %v168
    %v316 = vunpack.c.l.b16 %v169
    %v317 = vunpack.c.l.b16 %v170
    %v318 = vunpack.c.l.b16 %v171
    %v319 = vunpack.c.l.b16 %v172
    %v320 = vunpack.c.l.b16 %v173
    %v321 = vpack.c.b16 %v306, %v305
    %v322 = vpack.c.b16 %v308, %v307
    %v323 = vpack.c.b16 %v310, %v309
    %v324 = vpack.c.b16 %v312, %v311
    %v325 = vpack.c.b16 %v314, %v313
    %v326 = vpack.c.b16 %v316, %v315
    %v327 = vpack.c.b16 %v318, %v317
    %v328 = vpack.c.b16 %v320, %v319
    %337 = vmatprep.subr.bf16.mxu0 0
    %338 = vmatpush1.bf16.msra.mxu0 %v328
    %339 = vmatprep.subr.bf16.mxu0 0
    %340 = vmatpush1.bf16.msra.mxu0 %v327
    %341 = vmatprep.subr.bf16.mxu0 0
    %342 = vmatpush1.bf16.msra.mxu0 %v326
    %343 = vmatprep.subr.bf16.mxu0 0
    %344 = vmatpush1.bf16.msra.mxu0 %v325
    %345 = vmatprep.subr.bf16.mxu0 0
    %346 = vmatpush1.bf16.msra.mxu0 %v324
    %347 = vmatprep.subr.bf16.mxu0 0
    %348 = vmatpush1.bf16.msra.mxu0 %v323
    %349 = vmatprep.subr.bf16.mxu0 0
    %350 = vmatpush1.bf16.msra.mxu0 %v322
    %351 = vmatprep.subr.bf16.mxu0 0
    %352 = vmatpush1.bf16.msra.mxu0 %v321
    %353 = vmatprep.subr.bf16.mxu0 0
    %354 = vmatpush2.bf16.msra.mxu0 0
    %355 = vmatprep.subr.bf16.mxu0 0
    %356 = vmatpush2.bf16.msra.mxu0 0
    %357 = vmatprep.subr.bf16.mxu0 0
    %358 = vmatpush2.bf16.msra.mxu0 0
    %359 = vmatprep.subr.bf16.mxu0 0
    %360 = vmatpush2.bf16.msra.mxu0 0
    %361 = vmatprep.subr.bf16.mxu0 0
    %362 = vmatpush2.bf16.msra.mxu0 0
    %363 = vmatprep.subr.bf16.mxu0 0
    %364 = vmatpush2.bf16.msra.mxu0 0
    %365 = vmatprep.subr.bf16.mxu0 0
    %366 = vmatpush2.bf16.msra.mxu0 0
    %367 = vmatprep.subr.bf16.mxu0 0
    %368 = vmatpush2.bf16.msra.mxu0 0
    %369 = vmatprep.mubr.bf16.mxu0 0
    %370 = vmatmul.mubr.bf16.gmra.mxu0 %v287
    %v371 = vpop.f32.mrf.mxu0
    %v372 = vadd.f32 %v277, %v371
    %v373 = vpop.f32.mrf.mxu0
    %v374 = vpop.f32.mrf.mxu0
    %v375 = vadd.f32 %v280, %v374
    %v376 = vpop.f32.mrf.mxu0
    %377 = vdwg.mxu0
    %v378 = vld [vmem:[%s3] sm:$0x1]
    %v380 = vlaneseq
    %v381 = vshrl.u32 %v380, 7
    %v382 = vsub.s32 0, %v381
    %v383 = vrot.slane %v378, %v382
    %v385 = vadd.f32 %v372, %v383
    %v386 = vadd.f32 %v375, %v383
    %387 = vmax.xlane.f32.xlu0 %v385
    %v388 = vpop.xlane.xlu0 %387
    %389 = vmax.xlane.f32.xlu0 %v386
    %v390 = vpop.xlane.xlu0 %389
    %v391 = vsub.f32 %v385, %v388
    %v392 = vsub.f32 %v386, %v390
    %v393 = vmul.f32 %v391, 1.442695
    %v394 = vpow.pop %v393
    %v395 = vmul.f32 %v392, 1.442695
    %v396 = vpow.pop %v395
    %397 = vadd.xlane.f32.xlu0 %v394
    %v398 = vpop.xlane.xlu0 %397
    %399 = vadd.xlane.f32.xlu0 %v396
    %v400 = vpop.xlane.xlu0 %399
    %v401 = vlog2.pop %v398
    %v402 = vmul.f32 %v401, 0.6931472
    %v403 = vlog2.pop %v400
    %v404 = vmul.f32 %v403, 0.6931472
    %v405 = vsub.f32 %v391, %v402
    %v406 = vsub.f32 %v392, %v404
    %407 = vst [vmem:[%s4] sm:$0xff] %v405
    %408 = vst [vmem:[%s4 + $0x8] sm:$0xff] %v406
  $region25: #{graphsage_forward.5} parent=0 // pred_fallthru
    _
  // Predicated region
  $region26: #{graphsage_forward.5} parent=0 // pred_check
    _
  $region27: #{graphsage_forward.5} parent=0 // pred_check_branch
    %410 = sbr.rel (0) target = $region29
  $region28: #{graphsage_forward.5} parent=0 // pred_region
    _
  $region29: #{graphsage_forward.5} parent=0 // pred_fallthru
    _
  // Predicated region
  $region30: #{graphsage_forward.5} parent=0 // pred_check
    _
  $region31: #{graphsage_forward.5} parent=0 // pred_check_branch
    %412 = sbr.rel (0) target = $region33
  $region32: #{graphsage_forward.5} parent=0 // pred_region
    _
  $region33: #{graphsage_forward.5} parent=0 // pred_fallthru
    _

</llo_original>
